<compile_context>
chip_gen: v7x
topology: tpu7x:2x2x1
jax: 0.10.0
libtpu: 0.0.40
codegen_flags: <defaults>
</compile_context>

<pallas_src>
import functools

import jax
import jax.numpy as jnp
from jax.experimental import pallas as pl
from jax.experimental.pallas import tpu as pltpu


def _round_up(n, m):
    return ((n + m - 1) // m) * m


def _cdiv(a, b):
    return (a + b - 1) // b


def encoder_kernel(x_ref, eps_ref, w1_ref, b1_ref, w23_ref, b23_ref, out_ref,
                   *, latent, out_width):
    # fc1 + ReLU: bf16 x / bf16 w1 feed the MXU natively; accumulate in f32.
    h = jnp.dot(x_ref[...], w1_ref[...], preferred_element_type=jnp.float32)
    h = jnp.maximum(h + b1_ref[...], 0.0)          # f32 bias + ReLU (VPU)
    h16 = h.astype(jnp.bfloat16)

    # Fused mu / log-sigma heads: one (TB,512)x(512,2*latent) matmul.
    heads = (jnp.dot(h16, w23_ref[...], preferred_element_type=jnp.float32)
             + b23_ref[...])
    mu = heads[:, :latent]
    logsig = heads[:, latent:]
    sigma = jnp.exp(logsig)                        # EUP

    # Reparameterization trick.
    z = mu + sigma * eps_ref[...]

    # Per-row KL contribution: 0.5 * sum_j (sigma^2 + mu^2 - 2*log(sigma) - 1).
    kl_row = 0.5 * jnp.sum(sigma * sigma + mu * mu - 2.0 * logsig - 1.0,
                           axis=-1, keepdims=True)

    # Lane-dense output slab: [ z | mu | sigma | kl , zero-pad ] -> (TB, out_width),
    # stored with a single full-width (unmasked) store.
    tail_w = out_width - 3 * latent
    col = jax.lax.broadcasted_iota(jnp.int32, (z.shape[0], tail_w), 1)
    kl_tail = jnp.where(col == 0, kl_row, 0.0)
    out_ref[...] = jnp.concatenate([z, mu, sigma, kl_tail], axis=-1)


@functools.partial(jax.jit, static_argnames=("tile_b",))
def variational_encoder_forward(x, eps, w1, b1, w2, b2, w3, b3, *, tile_b=512):
    """x: (B, ...) with prod(...) == in_features.  Returns (z, mu, sigma, kl)."""
    B = x.shape[0]
    x2 = x.reshape(B, -1)                          # torch.flatten(x, start_dim=1)
    in_features = x2.shape[1]
    hidden = w1.shape[1]
    latent = w2.shape[1]

    # --- weight / input prep -------------------------------------------------
    # Pad K (in_features) to a lane multiple (1600 -> 1664) with zero columns.
    K_pad = _round_up(in_features, 128)
    if K_pad != in_features:
        x2 = jnp.pad(x2, ((0, 0), (0, K_pad - in_features)))
        w1 = jnp.pad(w1, ((0, K_pad - in_features), (0, 0)))

    x2 = x2.astype(jnp.bfloat16)                   # stream x in bf16
    eps_p = eps.astype(jnp.float32)

    w1b = w1.astype(jnp.bfloat16)
    w23b = jnp.concatenate([w2, w3], axis=1).astype(jnp.bfloat16)   # (hidden, 2L)
    b1_2d = b1.reshape(1, hidden).astype(jnp.float32)
    b23_2d = jnp.concatenate([b2, b3]).reshape(1, 2 * latent).astype(jnp.float32)

    # --- balanced batch tiling ----------------------------------------------
    # n_tiles chosen so padding never ~doubles work; force >= 2 steps when
    # B > 8 so both v7x TensorCores participate (no-op on v5e/v6e).
    n_tiles = _cdiv(B, tile_b)
    if B > 8:
        n_tiles = max(n_tiles, 2)
    TB = _round_up(_cdiv(B, n_tiles), 8)
    B_pad = _round_up(B, TB)
    if B_pad != B:
        pad = B_pad - B
        x2 = jnp.pad(x2, ((0, pad), (0, 0)))
        eps_p = jnp.pad(eps_p, ((0, pad), (0, 0)))

    grid = (B_pad // TB,)
    out_width = _round_up(3 * latent + 1, 128)     # lane-dense packed output

    row_spec = lambda shape: pl.BlockSpec(shape, lambda i: (i, 0))    # per-tile
    const_spec = lambda shape: pl.BlockSpec(shape, lambda i: (0, 0))  # resident

    kernel = functools.partial(encoder_kernel, latent=latent, out_width=out_width)

    packed = pl.pallas_call(
        kernel,
        out_shape=jax.ShapeDtypeStruct((B_pad, out_width), jnp.float32),
        grid=grid,
        in_specs=[
            row_spec((TB, K_pad)),              # x tile (bf16)
            row_spec((TB, latent)),             # eps tile (f32)
            const_spec((K_pad, hidden)),        # w1 (bf16, VMEM-resident)
            const_spec((1, hidden)),            # b1 (f32)
            const_spec((hidden, 2 * latent)),   # fused w2|w3 (bf16)
            const_spec((1, 2 * latent)),        # fused b2|b3 (f32)
        ],
        out_specs=row_spec((TB, out_width)),    # lane-dense packed output
        compiler_params=pltpu.CompilerParams(
            dimension_semantics=("parallel",),  # shard batch over v7x TCs
            vmem_limit_bytes=32 * 1024 * 1024), # safe on v5e's 16 MiB default
    )(x2, eps_p, w1b, b1_2d, w23b, b23_2d)

    z = packed[:B, 0:latent]
    mu = packed[:B, latent:2 * latent]
    sigma = packed[:B, 2 * latent:3 * latent]
    kl = jnp.sum(packed[:B, 3 * latent])        # scalar batch-sum of per-row KL
    return z, mu, sigma, kl


def init_encoder_params(key, latent_dims, in_features=1600, hidden=512):
    """PyTorch-style init: U(-1/sqrt(fan_in), 1/sqrt(fan_in)), (in, out) layout."""
    ks = jax.random.split(key, 6)
    lim1 = 1.0 / jnp.sqrt(in_features)
    lim2 = 1.0 / jnp.sqrt(hidden)
    w1 = jax.random.uniform(ks[0], (in_features, hidden), jnp.float32, -lim1, lim1)
    b1 = jax.random.uniform(ks[1], (hidden,), jnp.float32, -lim1, lim1)
    w2 = jax.random.uniform(ks[2], (hidden, latent_dims), jnp.float32, -lim2, lim2)
    b2 = jax.random.uniform(ks[3], (latent_dims,), jnp.float32, -lim2, lim2)
    w3 = jax.random.uniform(ks[4], (hidden, latent_dims), jnp.float32, -lim2, lim2)
    b3 = jax.random.uniform(ks[5], (latent_dims,), jnp.float32, -lim2, lim2)
    return w1, b1, w2, b2, w3, b3


def encoder_reference(x, eps, w1, b1, w2, b2, w3, b3):
    """Plain-JAX reference matching the kernel numerics (bf16 matmul operands,
    f32 accumulation / elementwise)."""
    bf = lambda a: a.astype(jnp.bfloat16).astype(jnp.float32)
    hp = jax.lax.Precision.HIGHEST
    x2 = x.reshape(x.shape[0], -1)
    h = jnp.maximum(jnp.dot(bf(x2), bf(w1), precision=hp) + b1, 0.0)
    mu = jnp.dot(bf(h), bf(w2), precision=hp) + b2
    logsig = jnp.dot(bf(h), bf(w3), precision=hp) + b3
    sigma = jnp.exp(logsig)
    z = mu + sigma * eps
    kl = 0.5 * jnp.sum(sigma ** 2 + mu ** 2 - 2.0 * logsig - 1.0)
    return z, mu, sigma, kl


if __name__ == "__main__":
    latent_dims = 32
    batch = 2
    # 1600 input features = a 1x40x40 "image" per sample (flattened in-forward).
    x_shape = (batch, 1, 40, 40)

    key = jax.random.PRNGKey(0)
    kx, keps, kp = jax.random.split(key, 3)
    x = jax.random.normal(kx, x_shape, jnp.float32)
    # TODO(synk): torch.distributions.Normal(0,1).sample has no in-kernel
    # equivalent with a reproducible reference; the standard-normal noise is
    # passed in explicitly (standard reparameterization trick).
    eps = jax.random.normal(keps, (batch, latent_dims), jnp.float32)
    params = init_encoder_params(kp, latent_dims)

    z, mu, sigma, kl = variational_encoder_forward(x, eps, *params)
    (z, mu, sigma, kl) = jax.block_until_ready((z, mu, sigma, kl))

    z_r, mu_r, sig_r, kl_r = encoder_reference(x, eps, *params)

    assert z.shape == (batch, latent_dims), z.shape
    assert mu.shape == (batch, latent_dims), mu.shape
    assert sigma.shape == (batch, latent_dims), sigma.shape
    assert jnp.allclose(mu, mu_r, atol=1e-3, rtol=1e-3), "mu mismatch"
    assert jnp.allclose(sigma, sig_r, atol=1e-3, rtol=1e-3), "sigma mismatch"
    assert jnp.allclose(z, z_r, atol=1e-3, rtol=1e-3), "z mismatch"
    assert jnp.allclose(kl, kl_r, atol=1e-2, rtol=1e-3), "kl mismatch"

    print("KERNEL_OK")
</pallas_src>

<mosaic_0001>
module attributes {stable_mosaic.version = 11 : i64} {
  func.func @encoder_kernel(%arg0: i32, %arg1: memref<8x1664xbf16, #tpu.memory_space<vmem>>, %arg2: memref<8x32xf32, #tpu.memory_space<vmem>>, %arg3: memref<1664x512xbf16, #tpu.memory_space<vmem>>, %arg4: memref<1x512xf32, #tpu.memory_space<vmem>>, %arg5: memref<512x64xbf16, #tpu.memory_space<vmem>>, %arg6: memref<1x64xf32, #tpu.memory_space<vmem>>, %arg7: memref<8x128xf32, #tpu.memory_space<vmem>>) attributes {dimension_semantics = [#tpu.dimension_semantics<parallel>], iteration_bounds = array<i64: 1>, scalar_prefetch = 0 : i64, scratch_operands = 0 : i64, tpu.core_type = #tpu.core_type<tc>, window_params = [{transform_indices = @transform_0, window_bounds = array<i64: 8, 1664>}, {transform_indices = @transform_1, window_bounds = array<i64: 8, 32>}, {pipeline_mode = #tpu.pipeline_mode<synchronous>, transform_indices = @transform_2, window_bounds = array<i64: 1664, 512>}, {pipeline_mode = #tpu.pipeline_mode<synchronous>, transform_indices = @transform_3, window_bounds = array<i64: 1, 512>}, {pipeline_mode = #tpu.pipeline_mode<synchronous>, transform_indices = @transform_4, window_bounds = array<i64: 512, 64>}, {pipeline_mode = #tpu.pipeline_mode<synchronous>, transform_indices = @transform_5, window_bounds = array<i64: 1, 64>}, {transform_indices = @transform_6, window_bounds = array<i64: 8, 128>}]} {
    %c0 = arith.constant 0 : index
    %c0_0 = arith.constant 0 : index
    %0 = vector.load %arg1[%c0, %c0_0] : memref<8x1664xbf16, #tpu.memory_space<vmem>>, vector<8x1664xbf16>
    %c0_1 = arith.constant 0 : index
    %c0_2 = arith.constant 0 : index
    %1 = vector.load %arg3[%c0_1, %c0_2] : memref<1664x512xbf16, #tpu.memory_space<vmem>>, vector<1664x512xbf16>
    %cst = arith.constant dense<0.000000e+00> : vector<8x512xf32>
    %2 = tpu.matmul %0, %1, %cst {dimension_numbers = #tpu.dot_dimension_numbers<[1], [0], [0], [1], [0, 0, 1, 1], [], []>} : vector<8x1664xbf16>, vector<1664x512xbf16>, vector<8x512xf32> -> vector<8x512xf32>
    %c0_3 = arith.constant 0 : index
    %c0_4 = arith.constant 0 : index
    %3 = vector.load %arg4[%c0_3, %c0_4] : memref<1x512xf32, #tpu.memory_space<vmem>>, vector<1x512xf32>
    %4 = vector.broadcast %3 : vector<1x512xf32> to vector<8x512xf32>
    %5 = arith.addf %2, %4 : vector<8x512xf32>
    %cst_5 = arith.constant 0.000000e+00 : f32
    %6 = vector.broadcast %cst_5 : f32 to vector<8x512xf32>
    %7 = arith.maximumf %5, %6 : vector<8x512xf32>
    %8 = arith.truncf %7 : vector<8x512xf32> to vector<8x512xbf16>
    %c0_6 = arith.constant 0 : index
    %c0_7 = arith.constant 0 : index
    %9 = vector.load %arg5[%c0_6, %c0_7] : memref<512x64xbf16, #tpu.memory_space<vmem>>, vector<512x64xbf16>
    %cst_8 = arith.constant dense<0.000000e+00> : vector<8x64xf32>
    %10 = tpu.matmul %8, %9, %cst_8 {dimension_numbers = #tpu.dot_dimension_numbers<[1], [0], [0], [1], [0, 0, 1, 1], [], []>} : vector<8x512xbf16>, vector<512x64xbf16>, vector<8x64xf32> -> vector<8x64xf32>
    %c0_9 = arith.constant 0 : index
    %c0_10 = arith.constant 0 : index
    %11 = vector.load %arg6[%c0_9, %c0_10] : memref<1x64xf32, #tpu.memory_space<vmem>>, vector<1x64xf32>
    %12 = vector.broadcast %11 : vector<1x64xf32> to vector<8x64xf32>
    %13 = arith.addf %10, %12 : vector<8x64xf32>
    %14 = vector.extract_strided_slice %13 {offsets = [0, 0], sizes = [8, 32], strides = [1, 1]} : vector<8x64xf32> to vector<8x32xf32>
    %15 = vector.extract_strided_slice %13 {offsets = [0, 32], sizes = [8, 32], strides = [1, 1]} : vector<8x64xf32> to vector<8x32xf32>
    %16 = math.exp %15 : vector<8x32xf32>
    %c0_11 = arith.constant 0 : index
    %c0_12 = arith.constant 0 : index
    %17 = vector.load %arg2[%c0_11, %c0_12] : memref<8x32xf32, #tpu.memory_space<vmem>>, vector<8x32xf32>
    %18 = arith.mulf %16, %17 : vector<8x32xf32>
    %19 = arith.addf %14, %18 : vector<8x32xf32>
    %20 = arith.mulf %16, %16 : vector<8x32xf32>
    %21 = arith.mulf %14, %14 : vector<8x32xf32>
    %22 = arith.addf %20, %21 : vector<8x32xf32>
    %cst_13 = arith.constant 2.000000e+00 : f32
    %23 = vector.broadcast %cst_13 : f32 to vector<8x32xf32>
    %24 = arith.mulf %23, %15 : vector<8x32xf32>
    %25 = arith.subf %22, %24 : vector<8x32xf32>
    %cst_14 = arith.constant 1.000000e+00 : f32
    %26 = vector.broadcast %cst_14 : f32 to vector<8x32xf32>
    %27 = arith.subf %25, %26 : vector<8x32xf32>
    %cst_15 = arith.constant dense<0.000000e+00> : vector<8xf32>
    %28 = vector.multi_reduction <add>, %27, %cst_15 [1] : vector<8x32xf32> to vector<8xf32>
    %29 = vector.shape_cast %28 : vector<8xf32> to vector<8x1xf32>
    %cst_16 = arith.constant 5.000000e-01 : f32
    %30 = vector.broadcast %cst_16 : f32 to vector<8x1xf32>
    %31 = arith.mulf %30, %29 : vector<8x1xf32>
    %32 = tpu.iota {dimensions = array<i32: 1>} : vector<8x32xi32>
    %c0_i32 = arith.constant 0 : i32
    %33 = vector.broadcast %c0_i32 : i32 to vector<8x32xi32>
    %34 = arith.cmpi eq, %32, %33 : vector<8x32xi32>
    %cst_17 = arith.constant 0.000000e+00 : f32
    %35 = vector.shape_cast %31 : vector<8x1xf32> to vector<8x1xf32>
    %36 = vector.broadcast %35 : vector<8x1xf32> to vector<8x32xf32>
    %37 = vector.broadcast %cst_17 : f32 to vector<8x32xf32>
    %38 = arith.select %34, %36, %37 : vector<8x32xi1>, vector<8x32xf32>
    %39 = tpu.concatenate %19, %14, %16, %38 in 1 : vector<8x32xf32>, vector<8x32xf32>, vector<8x32xf32>, vector<8x32xf32> -> vector<8x128xf32>
    %c0_18 = arith.constant 0 : index
    %c0_19 = arith.constant 0 : index
    %40 = vector.load %arg7[%c0_18, %c0_19] : memref<8x128xf32, #tpu.memory_space<vmem>>, vector<8x128xf32>
    tpu.vector_store %arg7[%c0_18, %c0_19], %39 {strides = array<i32>} : memref<8x128xf32, #tpu.memory_space<vmem>>, vector<8x128xf32>,
    return
  }
  func.func @transform_0(%arg0: i32) -> (i32, i32) {
    %c0_i32 = arith.constant 0 : i32
    %c0_i32_0 = arith.constant 0 : i32
    return %arg0, %c0_i32 : i32, i32
  }
  func.func @transform_1(%arg0: i32) -> (i32, i32) {
    %c0_i32 = arith.constant 0 : i32
    %c0_i32_0 = arith.constant 0 : i32
    return %arg0, %c0_i32 : i32, i32
  }
  func.func @transform_2(%arg0: i32) -> (i32, i32) {
    %c0_i32 = arith.constant 0 : i32
    %c0_i32_0 = arith.constant 0 : i32
    %c0_i32_1 = arith.constant 0 : i32
    return %c0_i32, %c0_i32_0 : i32, i32
  }
  func.func @transform_3(%arg0: i32) -> (i32, i32) {
    %c0_i32 = arith.constant 0 : i32
    %c0_i32_0 = arith.constant 0 : i32
    %c0_i32_1 = arith.constant 0 : i32
    return %c0_i32, %c0_i32_0 : i32, i32
  }
  func.func @transform_4(%arg0: i32) -> (i32, i32) {
    %c0_i32 = arith.constant 0 : i32
    %c0_i32_0 = arith.constant 0 : i32
    %c0_i32_1 = arith.constant 0 : i32
    return %c0_i32, %c0_i32_0 : i32, i32
  }
  func.func @transform_5(%arg0: i32) -> (i32, i32) {
    %c0_i32 = arith.constant 0 : i32
    %c0_i32_0 = arith.constant 0 : i32
    %c0_i32_1 = arith.constant 0 : i32
    return %c0_i32, %c0_i32_0 : i32, i32
  }
  func.func @transform_6(%arg0: i32) -> (i32, i32) {
    %c0_i32 = arith.constant 0 : i32
    %c0_i32_0 = arith.constant 0 : i32
    return %arg0, %c0_i32 : i32, i32
  }
}

</mosaic_0001>

<llo_original>
// kernel: variational_encoder_forward.1
$region0: #{variational_encoder_forward.1}
  #allocation0 [shape = 'u32[]', space=smem, size = 0x4, offset = 0x4, fixed_abs, tag = 'smem constant byte address 0x4 - core index']
  #allocation1 [shape = 'u32[144,128]{1,0:T(1,128)}', space=vmem, size = 0x12000, scoped, tag = 'internal scratch']
  %s0 = inlined_call_operand.vmem [shape: bf16[8,1664], index: 0, kind: input, shape index: {}]
  %s1 = inlined_call_operand.vmem [shape: f32[8,32], index: 1, kind: input, shape index: {}]
  %s2 = inlined_call_operand.vmem [shape: bf16[1664,512], index: 2, kind: input, shape index: {}]
  %s3 = inlined_call_operand.vmem [shape: f32[1,512], index: 3, kind: input, shape index: {}]
  %s4 = inlined_call_operand.vmem [shape: bf16[512,64], index: 4, kind: input, shape index: {}]
  %s5 = inlined_call_operand.vmem [shape: f32[1,64], index: 5, kind: input, shape index: {}]
  %s6 = inlined_call_operand.vmem [shape: f32[8,128], index: 6, kind: output, shape index: {}]
  %s7 = sld [smem:[#allocation0]]
  $region34: #{variational_encoder_forward.1} parent=0
    _
  %s9 = ssub.s32 1, %s7
  %s10 = scalar_select 0, %s9, %s7
  // Predicated region
  $region2: #{variational_encoder_forward.1} parent=0 // pred_check
    _
  $region3: #{variational_encoder_forward.1} parent=0 // pred_check_branch
    %12 = sbr.rel (0) target = $region5
  $region4: #{variational_encoder_forward.1} parent=0 // pred_region
    _
  $region5: #{variational_encoder_forward.1} parent=0 // pred_fallthru
    _
  // Predicated region
  $region6: #{variational_encoder_forward.1} parent=0 // pred_check
    _
  $region7: #{variational_encoder_forward.1} parent=0 // pred_check_branch
    %14 = sbr.rel (0) target = $region9
  $region8: #{variational_encoder_forward.1} parent=0 // pred_region
    _
  $region9: #{variational_encoder_forward.1} parent=0 // pred_fallthru
    _
  // Predicated region
  $region10: #{variational_encoder_forward.1} parent=0 // pred_check
    _
  $region11: #{variational_encoder_forward.1} parent=0 // pred_check_branch
    %16 = sbr.rel (0) target = $region13
  $region12: #{variational_encoder_forward.1} parent=0 // pred_region
    _
  $region13: #{variational_encoder_forward.1} parent=0 // pred_fallthru
    _
  // Predicated region
  $region14: #{variational_encoder_forward.1} parent=0 // pred_check
    _
  $region15: #{variational_encoder_forward.1} parent=0 // pred_check_branch
    %18 = sbr.rel (0) target = $region17
  $region16: #{variational_encoder_forward.1} parent=0 // pred_region
    _
  $region17: #{variational_encoder_forward.1} parent=0 // pred_fallthru
    _
  // Predicated region
  $region18: #{variational_encoder_forward.1} parent=0 // pred_check
    _
  $region19: #{variational_encoder_forward.1} parent=0 // pred_check_branch
    %20 = sbr.rel (0) target = $region21
  $region20: #{variational_encoder_forward.1} parent=0 // pred_region
    _
  $region21: #{variational_encoder_forward.1} parent=0 // pred_fallthru
    _
  // Predicated region
  $region22: #{variational_encoder_forward.1} parent=0 // pred_check
    _
  $region23: #{variational_encoder_forward.1} parent=0 // pred_check_branch
    %22 = sbr.rel (0) target = $region25
  $region24: #{variational_encoder_forward.1} parent=0 // pred_region
    _
  $region25: #{variational_encoder_forward.1} parent=0 // pred_fallthru
    _
  %v24 = vld [vmem:[%s0] sm:$0xff]
  %v25 = vld [vmem:[%s0 + $0x8] sm:$0xff]
  %v26 = vld [vmem:[%s0 + $0x10] sm:$0xff]
  %v27 = vld [vmem:[%s0 + $0x18] sm:$0xff]
  %v28 = vld [vmem:[%s0 + $0x20] sm:$0xff]
  %v29 = vld [vmem:[%s0 + $0x28] sm:$0xff]
  %v30 = vld [vmem:[%s0 + $0x30] sm:$0xf]
  %v31 = vld [vmem:[%s2] sm:$0xff]
  %v32 = vld [vmem:[%s2 + $0x8] sm:$0xff]
  %v33 = vld [vmem:[%s2 + $0x10] sm:$0xff]
  %v34 = vld [vmem:[%s2 + $0x18] sm:$0xff]
  %v35 = vld [vmem:[%s2 + $0x20] sm:$0xff]
  %v36 = vld [vmem:[%s2 + $0x28] sm:$0xff]
  %v37 = vld [vmem:[%s2 + $0x30] sm:$0xff]
  %v38 = vld [vmem:[%s2 + $0x38] sm:$0xff]
  %v39 = vld [vmem:[%s2 + $0x40] sm:$0xff]
  %v40 = vld [vmem:[%s2 + $0x48] sm:$0xff]
  %v41 = vld [vmem:[%s2 + $0x50] sm:$0xff]
  %v42 = vld [vmem:[%s2 + $0x58] sm:$0xff]
  %v43 = vld [vmem:[%s2 + $0x60] sm:$0xff]
  %v44 = vld [vmem:[%s2 + $0x68] sm:$0xff]
  %v45 = vld [vmem:[%s2 + $0x70] sm:$0xff]
  %v46 = vld [vmem:[%s2 + $0x78] sm:$0xff]
  %v47 = vld [vmem:[%s2 + $0x80] sm:$0xff]
  %v48 = vld [vmem:[%s2 + $0x88] sm:$0xff]
  %v49 = vld [vmem:[%s2 + $0x90] sm:$0xff]
  %v50 = vld [vmem:[%s2 + $0x98] sm:$0xff]
  %v51 = vld [vmem:[%s2 + $0xa0] sm:$0xff]
  %v52 = vld [vmem:[%s2 + $0xa8] sm:$0xff]
  %v53 = vld [vmem:[%s2 + $0xb0] sm:$0xff]
  %v54 = vld [vmem:[%s2 + $0xb8] sm:$0xff]
  %v55 = vld [vmem:[%s2 + $0xc0] sm:$0xff]
  %v56 = vld [vmem:[%s2 + $0xc8] sm:$0xff]
  %v57 = vld [vmem:[%s2 + $0xd0] sm:$0xff]
  %v58 = vld [vmem:[%s2 + $0xd8] sm:$0xff]
  %v59 = vld [vmem:[%s2 + $0xe0] sm:$0xff]
  %v60 = vld [vmem:[%s2 + $0xe8] sm:$0xff]
  %v61 = vld [vmem:[%s2 + $0xf0] sm:$0xff]
  %v62 = vld [vmem:[%s2 + $0xf8] sm:$0xff]
  %v63 = vld [vmem:[%s2 + $0x100] sm:$0xff]
  %v64 = vld [vmem:[%s2 + $0x108] sm:$0xff]
  %v65 = vld [vmem:[%s2 + $0x110] sm:$0xff]
  %v66 = vld [vmem:[%s2 + $0x118] sm:$0xff]
  %v67 = vld [vmem:[%s2 + $0x120] sm:$0xff]
  %v68 = vld [vmem:[%s2 + $0x128] sm:$0xff]
  %v69 = vld [vmem:[%s2 + $0x130] sm:$0xff]
  %v70 = vld [vmem:[%s2 + $0x138] sm:$0xff]
  %v71 = vld [vmem:[%s2 + $0x140] sm:$0xff]
  %v72 = vld [vmem:[%s2 + $0x148] sm:$0xff]
  %v73 = vld [vmem:[%s2 + $0x150] sm:$0xff]
  %v74 = vld [vmem:[%s2 + $0x158] sm:$0xff]
  %v75 = vld [vmem:[%s2 + $0x160] sm:$0xff]
  %v76 = vld [vmem:[%s2 + $0x168] sm:$0xff]
  %v77 = vld [vmem:[%s2 + $0x170] sm:$0xff]
  %v78 = vld [vmem:[%s2 + $0x178] sm:$0xff]
  %v79 = vld [vmem:[%s2 + $0x180] sm:$0xff]
  %v80 = vld [vmem:[%s2 + $0x188] sm:$0xff]
  %v81 = vld [vmem:[%s2 + $0x190] sm:$0xff]
  %v82 = vld [vmem:[%s2 + $0x198] sm:$0xff]
  %v83 = vld [vmem:[%s2 + $0x1a0] sm:$0xff]
  %v84 = vld [vmem:[%s2 + $0x1a8] sm:$0xff]
  %v85 = vld [vmem:[%s2 + $0x1b0] sm:$0xff]
  %v86 = vld [vmem:[%s2 + $0x1b8] sm:$0xff]
  %v87 = vld [vmem:[%s2 + $0x1c0] sm:$0xff]
  %v88 = vld [vmem:[%s2 + $0x1c8] sm:$0xff]
  %v89 = vld [vmem:[%s2 + $0x1d0] sm:$0xff]
  %v90 = vld [vmem:[%s2 + $0x1d8] sm:$0xff]
  %v91 = vld [vmem:[%s2 + $0x1e0] sm:$0xff]
  %v92 = vld [vmem:[%s2 + $0x1e8] sm:$0xff]
  %v93 = vld [vmem:[%s2 + $0x1f0] sm:$0xff]
  %v94 = vld [vmem:[%s2 + $0x1f8] sm:$0xff]
  %v95 = vld [vmem:[%s2 + $0x200] sm:$0xff]
  %v96 = vld [vmem:[%s2 + $0x208] sm:$0xff]
  %v97 = vld [vmem:[%s2 + $0x210] sm:$0xff]
  %v98 = vld [vmem:[%s2 + $0x218] sm:$0xff]
  %v99 = vld [vmem:[%s2 + $0x220] sm:$0xff]
  %v100 = vld [vmem:[%s2 + $0x228] sm:$0xff]
  %v101 = vld [vmem:[%s2 + $0x230] sm:$0xff]
  %v102 = vld [vmem:[%s2 + $0x238] sm:$0xff]
  %v103 = vld [vmem:[%s2 + $0x240] sm:$0xff]
  %v104 = vld [vmem:[%s2 + $0x248] sm:$0xff]
  %v105 = vld [vmem:[%s2 + $0x250] sm:$0xff]
  %v106 = vld [vmem:[%s2 + $0x258] sm:$0xff]
  %v107 = vld [vmem:[%s2 + $0x260] sm:$0xff]
  %v108 = vld [vmem:[%s2 + $0x268] sm:$0xff]
  %v109 = vld [vmem:[%s2 + $0x270] sm:$0xff]
  %v110 = vld [vmem:[%s2 + $0x278] sm:$0xff]
  %v111 = vld [vmem:[%s2 + $0x280] sm:$0xff]
  %v112 = vld [vmem:[%s2 + $0x288] sm:$0xff]
  %v113 = vld [vmem:[%s2 + $0x290] sm:$0xff]
  %v114 = vld [vmem:[%s2 + $0x298] sm:$0xff]
  %v115 = vld [vmem:[%s2 + $0x2a0] sm:$0xff]
  %v116 = vld [vmem:[%s2 + $0x2a8] sm:$0xff]
  %v117 = vld [vmem:[%s2 + $0x2b0] sm:$0xff]
  %v118 = vld [vmem:[%s2 + $0x2b8] sm:$0xff]
  %v119 = vld [vmem:[%s2 + $0x2c0] sm:$0xff]
  %v120 = vld [vmem:[%s2 + $0x2c8] sm:$0xff]
  %v121 = vld [vmem:[%s2 + $0x2d0] sm:$0xff]
  %v122 = vld [vmem:[%s2 + $0x2d8] sm:$0xff]
  %v123 = vld [vmem:[%s2 + $0x2e0] sm:$0xff]
  %v124 = vld [vmem:[%s2 + $0x2e8] sm:$0xff]
  %v125 = vld [vmem:[%s2 + $0x2f0] sm:$0xff]
  %v126 = vld [vmem:[%s2 + $0x2f8] sm:$0xff]
  %v127 = vld [vmem:[%s2 + $0x300] sm:$0xff]
  %v128 = vld [vmem:[%s2 + $0x308] sm:$0xff]
  %v129 = vld [vmem:[%s2 + $0x310] sm:$0xff]
  %v130 = vld [vmem:[%s2 + $0x318] sm:$0xff]
  %v131 = vld [vmem:[%s2 + $0x320] sm:$0xff]
  %v132 = vld [vmem:[%s2 + $0x328] sm:$0xff]
  %v133 = vld [vmem:[%s2 + $0x330] sm:$0xff]
  %v134 = vld [vmem:[%s2 + $0x338] sm:$0xff]
  %v135 = vld [vmem:[%s2 + $0x340] sm:$0xff]
  %v136 = vld [vmem:[%s2 + $0x348] sm:$0xff]
  %v137 = vld [vmem:[%s2 + $0x350] sm:$0xff]
  %v138 = vld [vmem:[%s2 + $0x358] sm:$0xff]
  %v139 = vld [vmem:[%s2 + $0x360] sm:$0xff]
  %v140 = vld [vmem:[%s2 + $0x368] sm:$0xff]
  %v141 = vld [vmem:[%s2 + $0x370] sm:$0xff]
  %v142 = vld [vmem:[%s2 + $0x378] sm:$0xff]
  %v143 = vld [vmem:[%s2 + $0x380] sm:$0xff]
  %v144 = vld [vmem:[%s2 + $0x388] sm:$0xff]
  %v145 = vld [vmem:[%s2 + $0x390] sm:$0xff]
  %v146 = vld [vmem:[%s2 + $0x398] sm:$0xff]
  %v147 = vld [vmem:[%s2 + $0x3a0] sm:$0xff]
  %v148 = vld [vmem:[%s2 + $0x3a8] sm:$0xff]
  %v149 = vld [vmem:[%s2 + $0x3b0] sm:$0xff]
  %v150 = vld [vmem:[%s2 + $0x3b8] sm:$0xff]
  %v151 = vld [vmem:[%s2 + $0x3c0] sm:$0xff]
  %v152 = vld [vmem:[%s2 + $0x3c8] sm:$0xff]
  %v153 = vld [vmem:[%s2 + $0x3d0] sm:$0xff]
  %v154 = vld [vmem:[%s2 + $0x3d8] sm:$0xff]
  %v155 = vld [vmem:[%s2 + $0x3e0] sm:$0xff]
  %v156 = vld [vmem:[%s2 + $0x3e8] sm:$0xff]
  %v157 = vld [vmem:[%s2 + $0x3f0] sm:$0xff]
  %v158 = vld [vmem:[%s2 + $0x3f8] sm:$0xff]
  %v159 = vld [vmem:[%s2 + $0x400] sm:$0xff]
  %v160 = vld [vmem:[%s2 + $0x408] sm:$0xff]
  %v161 = vld [vmem:[%s2 + $0x410] sm:$0xff]
  %v162 = vld [vmem:[%s2 + $0x418] sm:$0xff]
  %v163 = vld [vmem:[%s2 + $0x420] sm:$0xff]
  %v164 = vld [vmem:[%s2 + $0x428] sm:$0xff]
  %v165 = vld [vmem:[%s2 + $0x430] sm:$0xff]
  %v166 = vld [vmem:[%s2 + $0x438] sm:$0xff]
  %v167 = vld [vmem:[%s2 + $0x440] sm:$0xff]
  %v168 = vld [vmem:[%s2 + $0x448] sm:$0xff]
  %v169 = vld [vmem:[%s2 + $0x450] sm:$0xff]
  %v170 = vld [vmem:[%s2 + $0x458] sm:$0xff]
  %v171 = vld [vmem:[%s2 + $0x460] sm:$0xff]
  %v172 = vld [vmem:[%s2 + $0x468] sm:$0xff]
  %v173 = vld [vmem:[%s2 + $0x470] sm:$0xff]
  %v174 = vld [vmem:[%s2 + $0x478] sm:$0xff]
  %v175 = vld [vmem:[%s2 + $0x480] sm:$0xff]
  %v176 = vld [vmem:[%s2 + $0x488] sm:$0xff]
  %v177 = vld [vmem:[%s2 + $0x490] sm:$0xff]
  %v178 = vld [vmem:[%s2 + $0x498] sm:$0xff]
  %v179 = vld [vmem:[%s2 + $0x4a0] sm:$0xff]
  %v180 = vld [vmem:[%s2 + $0x4a8] sm:$0xff]
  %v181 = vld [vmem:[%s2 + $0x4b0] sm:$0xff]
  %v182 = vld [vmem:[%s2 + $0x4b8] sm:$0xff]
  %v183 = vld [vmem:[%s2 + $0x4c0] sm:$0xff]
  %v184 = vld [vmem:[%s2 + $0x4c8] sm:$0xff]
  %v185 = vld [vmem:[%s2 + $0x4d0] sm:$0xff]
  %v186 = vld [vmem:[%s2 + $0x4d8] sm:$0xff]
  %v187 = vld [vmem:[%s2 + $0x4e0] sm:$0xff]
  %v188 = vld [vmem:[%s2 + $0x4e8] sm:$0xff]
  %v189 = vld [vmem:[%s2 + $0x4f0] sm:$0xff]
  %v190 = vld [vmem:[%s2 + $0x4f8] sm:$0xff]
  %v191 = vld [vmem:[%s2 + $0x500] sm:$0xff]
  %v192 = vld [vmem:[%s2 + $0x508] sm:$0xff]
  %v193 = vld [vmem:[%s2 + $0x510] sm:$0xff]
  %v194 = vld [vmem:[%s2 + $0x518] sm:$0xff]
  %v195 = vld [vmem:[%s2 + $0x520] sm:$0xff]
  %v196 = vld [vmem:[%s2 + $0x528] sm:$0xff]
  %v197 = vld [vmem:[%s2 + $0x530] sm:$0xff]
  %v198 = vld [vmem:[%s2 + $0x538] sm:$0xff]
  %v199 = vld [vmem:[%s2 + $0x540] sm:$0xff]
  %v200 = vld [vmem:[%s2 + $0x548] sm:$0xff]
  %v201 = vld [vmem:[%s2 + $0x550] sm:$0xff]
  %v202 = vld [vmem:[%s2 + $0x558] sm:$0xff]
  %v203 = vld [vmem:[%s2 + $0x560] sm:$0xff]
  %v204 = vld [vmem:[%s2 + $0x568] sm:$0xff]
  %v205 = vld [vmem:[%s2 + $0x570] sm:$0xff]
  %v206 = vld [vmem:[%s2 + $0x578] sm:$0xff]
  %v207 = vld [vmem:[%s2 + $0x580] sm:$0xff]
  %v208 = vld [vmem:[%s2 + $0x588] sm:$0xff]
  %v209 = vld [vmem:[%s2 + $0x590] sm:$0xff]
  %v210 = vld [vmem:[%s2 + $0x598] sm:$0xff]
  %v211 = vld [vmem:[%s2 + $0x5a0] sm:$0xff]
  %v212 = vld [vmem:[%s2 + $0x5a8] sm:$0xff]
  %v213 = vld [vmem:[%s2 + $0x5b0] sm:$0xff]
  %v214 = vld [vmem:[%s2 + $0x5b8] sm:$0xff]
  %v215 = vld [vmem:[%s2 + $0x5c0] sm:$0xff]
  %v216 = vld [vmem:[%s2 + $0x5c8] sm:$0xff]
  %v217 = vld [vmem:[%s2 + $0x5d0] sm:$0xff]
  %v218 = vld [vmem:[%s2 + $0x5d8] sm:$0xff]
  %v219 = vld [vmem:[%s2 + $0x5e0] sm:$0xff]
  %v220 = vld [vmem:[%s2 + $0x5e8] sm:$0xff]
  %v221 = vld [vmem:[%s2 + $0x5f0] sm:$0xff]
  %v222 = vld [vmem:[%s2 + $0x5f8] sm:$0xff]
  %v223 = vld [vmem:[%s2 + $0x600] sm:$0xff]
  %v224 = vld [vmem:[%s2 + $0x608] sm:$0xff]
  %v225 = vld [vmem:[%s2 + $0x610] sm:$0xff]
  %v226 = vld [vmem:[%s2 + $0x618] sm:$0xff]
  %v227 = vld [vmem:[%s2 + $0x620] sm:$0xff]
  %v228 = vld [vmem:[%s2 + $0x628] sm:$0xff]
  %v229 = vld [vmem:[%s2 + $0x630] sm:$0xff]
  %v230 = vld [vmem:[%s2 + $0x638] sm:$0xff]
  %v231 = vld [vmem:[%s2 + $0x640] sm:$0xff]
  %v232 = vld [vmem:[%s2 + $0x648] sm:$0xff]
  %v233 = vld [vmem:[%s2 + $0x650] sm:$0xff]
  %v234 = vld [vmem:[%s2 + $0x658] sm:$0xff]
  %v235 = vld [vmem:[%s2 + $0x660] sm:$0xff]
  %v236 = vld [vmem:[%s2 + $0x668] sm:$0xff]
  %v237 = vld [vmem:[%s2 + $0x670] sm:$0xff]
  %v238 = vld [vmem:[%s2 + $0x678] sm:$0xff]
  %v239 = vld [vmem:[%s2 + $0x680] sm:$0xff]
  %v240 = vld [vmem:[%s2 + $0x688] sm:$0xff]
  %v241 = vld [vmem:[%s2 + $0x690] sm:$0xff]
  %v242 = vld [vmem:[%s2 + $0x698] sm:$0xff]
  %v243 = vld [vmem:[%s2 + $0x6a0] sm:$0xff]
  %v244 = vld [vmem:[%s2 + $0x6a8] sm:$0xff]
  %v245 = vld [vmem:[%s2 + $0x6b0] sm:$0xff]
  %v246 = vld [vmem:[%s2 + $0x6b8] sm:$0xff]
  %v247 = vld [vmem:[%s2 + $0x6c0] sm:$0xff]
  %v248 = vld [vmem:[%s2 + $0x6c8] sm:$0xff]
  %v249 = vld [vmem:[%s2 + $0x6d0] sm:$0xff]
  %v250 = vld [vmem:[%s2 + $0x6d8] sm:$0xff]
  %v251 = vld [vmem:[%s2 + $0x6e0] sm:$0xff]
  %v252 = vld [vmem:[%s2 + $0x6e8] sm:$0xff]
  %v253 = vld [vmem:[%s2 + $0x6f0] sm:$0xff]
  %v254 = vld [vmem:[%s2 + $0x6f8] sm:$0xff]
  %v255 = vld [vmem:[%s2 + $0x700] sm:$0xff]
  %v256 = vld [vmem:[%s2 + $0x708] sm:$0xff]
  %v257 = vld [vmem:[%s2 + $0x710] sm:$0xff]
  %v258 = vld [vmem:[%s2 + $0x718] sm:$0xff]
  %v259 = vld [vmem:[%s2 + $0x720] sm:$0xff]
  %v260 = vld [vmem:[%s2 + $0x728] sm:$0xff]
  %v261 = vld [vmem:[%s2 + $0x730] sm:$0xff]
  %v262 = vld [vmem:[%s2 + $0x738] sm:$0xff]
  %v263 = vld [vmem:[%s2 + $0x740] sm:$0xff]
  %v264 = vld [vmem:[%s2 + $0x748] sm:$0xff]
  %v265 = vld [vmem:[%s2 + $0x750] sm:$0xff]
  %v266 = vld [vmem:[%s2 + $0x758] sm:$0xff]
  %v267 = vld [vmem:[%s2 + $0x760] sm:$0xff]
  %v268 = vld [vmem:[%s2 + $0x768] sm:$0xff]
  %v269 = vld [vmem:[%s2 + $0x770] sm:$0xff]
  %v270 = vld [vmem:[%s2 + $0x778] sm:$0xff]
  %v271 = vld [vmem:[%s2 + $0x780] sm:$0xff]
  %v272 = vld [vmem:[%s2 + $0x788] sm:$0xff]
  %v273 = vld [vmem:[%s2 + $0x790] sm:$0xff]
  %v274 = vld [vmem:[%s2 + $0x798] sm:$0xff]
  %v275 = vld [vmem:[%s2 + $0x7a0] sm:$0xff]
  %v276 = vld [vmem:[%s2 + $0x7a8] sm:$0xff]
  %v277 = vld [vmem:[%s2 + $0x7b0] sm:$0xff]
  %v278 = vld [vmem:[%s2 + $0x7b8] sm:$0xff]
  %v279 = vld [vmem:[%s2 + $0x7c0] sm:$0xff]
  %v280 = vld [vmem:[%s2 + $0x7c8] sm:$0xff]
  %v281 = vld [vmem:[%s2 + $0x7d0] sm:$0xff]
  %v282 = vld [vmem:[%s2 + $0x7d8] sm:$0xff]
  %v283 = vld [vmem:[%s2 + $0x7e0] sm:$0xff]
  %v284 = vld [vmem:[%s2 + $0x7e8] sm:$0xff]
  %v285 = vld [vmem:[%s2 + $0x7f0] sm:$0xff]
  %v286 = vld [vmem:[%s2 + $0x7f8] sm:$0xff]
  %v287 = vld [vmem:[%s2 + $0x800] sm:$0xff]
  %v288 = vld [vmem:[%s2 + $0x808] sm:$0xff]
  %v289 = vld [vmem:[%s2 + $0x810] sm:$0xff]
  %v290 = vld [vmem:[%s2 + $0x818] sm:$0xff]
  %v291 = vld [vmem:[%s2 + $0x820] sm:$0xff]
  %v292 = vld [vmem:[%s2 + $0x828] sm:$0xff]
  %v293 = vld [vmem:[%s2 + $0x830] sm:$0xff]
  %v294 = vld [vmem:[%s2 + $0x838] sm:$0xff]
  %v295 = vld [vmem:[%s2 + $0x840] sm:$0xff]
  %v296 = vld [vmem:[%s2 + $0x848] sm:$0xff]
  %v297 = vld [vmem:[%s2 + $0x850] sm:$0xff]
  %v298 = vld [vmem:[%s2 + $0x858] sm:$0xff]
  %v299 = vld [vmem:[%s2 + $0x860] sm:$0xff]
  %v300 = vld [vmem:[%s2 + $0x868] sm:$0xff]
  %v301 = vld [vmem:[%s2 + $0x870] sm:$0xff]
  %v302 = vld [vmem:[%s2 + $0x878] sm:$0xff]
  %v303 = vld [vmem:[%s2 + $0x880] sm:$0xff]
  %v304 = vld [vmem:[%s2 + $0x888] sm:$0xff]
  %v305 = vld [vmem:[%s2 + $0x890] sm:$0xff]
  %v306 = vld [vmem:[%s2 + $0x898] sm:$0xff]
  %v307 = vld [vmem:[%s2 + $0x8a0] sm:$0xff]
  %v308 = vld [vmem:[%s2 + $0x8a8] sm:$0xff]
  %v309 = vld [vmem:[%s2 + $0x8b0] sm:$0xff]
  %v310 = vld [vmem:[%s2 + $0x8b8] sm:$0xff]
  %v311 = vld [vmem:[%s2 + $0x8c0] sm:$0xff]
  %v312 = vld [vmem:[%s2 + $0x8c8] sm:$0xff]
  %v313 = vld [vmem:[%s2 + $0x8d0] sm:$0xff]
  %v314 = vld [vmem:[%s2 + $0x8d8] sm:$0xff]
  %v315 = vld [vmem:[%s2 + $0x8e0] sm:$0xff]
  %v316 = vld [vmem:[%s2 + $0x8e8] sm:$0xff]
  %v317 = vld [vmem:[%s2 + $0x8f0] sm:$0xff]
  %v318 = vld [vmem:[%s2 + $0x8f8] sm:$0xff]
  %v319 = vld [vmem:[%s2 + $0x900] sm:$0xff]
  %v320 = vld [vmem:[%s2 + $0x908] sm:$0xff]
  %v321 = vld [vmem:[%s2 + $0x910] sm:$0xff]
  %v322 = vld [vmem:[%s2 + $0x918] sm:$0xff]
  %v323 = vld [vmem:[%s2 + $0x920] sm:$0xff]
  %v324 = vld [vmem:[%s2 + $0x928] sm:$0xff]
  %v325 = vld [vmem:[%s2 + $0x930] sm:$0xff]
  %v326 = vld [vmem:[%s2 + $0x938] sm:$0xff]
  %v327 = vld [vmem:[%s2 + $0x940] sm:$0xff]
  %v328 = vld [vmem:[%s2 + $0x948] sm:$0xff]
  %v329 = vld [vmem:[%s2 + $0x950] sm:$0xff]
  %v330 = vld [vmem:[%s2 + $0x958] sm:$0xff]
  %v331 = vld [vmem:[%s2 + $0x960] sm:$0xff]
  %v332 = vld [vmem:[%s2 + $0x968] sm:$0xff]
  %v333 = vld [vmem:[%s2 + $0x970] sm:$0xff]
  %v334 = vld [vmem:[%s2 + $0x978] sm:$0xff]
  %v335 = vld [vmem:[%s2 + $0x980] sm:$0xff]
  %v336 = vld [vmem:[%s2 + $0x988] sm:$0xff]
  %v337 = vld [vmem:[%s2 + $0x990] sm:$0xff]
  %v338 = vld [vmem:[%s2 + $0x998] sm:$0xff]
  %v339 = vld [vmem:[%s2 + $0x9a0] sm:$0xff]
  %v340 = vld [vmem:[%s2 + $0x9a8] sm:$0xff]
  %v341 = vld [vmem:[%s2 + $0x9b0] sm:$0xff]
  %v342 = vld [vmem:[%s2 + $0x9b8] sm:$0xff]
  %v343 = vld [vmem:[%s2 + $0x9c0] sm:$0xff]
  %v344 = vld [vmem:[%s2 + $0x9c8] sm:$0xff]
  %v345 = vld [vmem:[%s2 + $0x9d0] sm:$0xff]
  %v346 = vld [vmem:[%s2 + $0x9d8] sm:$0xff]
  %v347 = vld [vmem:[%s2 + $0x9e0] sm:$0xff]
  %v348 = vld [vmem:[%s2 + $0x9e8] sm:$0xff]
  %v349 = vld [vmem:[%s2 + $0x9f0] sm:$0xff]
  %v350 = vld [vmem:[%s2 + $0x9f8] sm:$0xff]
  %v351 = vld [vmem:[%s2 + $0xa00] sm:$0xff]
  %v352 = vld [vmem:[%s2 + $0xa08] sm:$0xff]
  %v353 = vld [vmem:[%s2 + $0xa10] sm:$0xff]
  %v354 = vld [vmem:[%s2 + $0xa18] sm:$0xff]
  %v355 = vld [vmem:[%s2 + $0xa20] sm:$0xff]
  %v356 = vld [vmem:[%s2 + $0xa28] sm:$0xff]
  %v357 = vld [vmem:[%s2 + $0xa30] sm:$0xff]
  %v358 = vld [vmem:[%s2 + $0xa38] sm:$0xff]
  %v359 = vld [vmem:[%s2 + $0xa40] sm:$0xff]
  %v360 = vld [vmem:[%s2 + $0xa48] sm:$0xff]
  %v361 = vld [vmem:[%s2 + $0xa50] sm:$0xff]
  %v362 = vld [vmem:[%s2 + $0xa58] sm:$0xff]
  %v363 = vld [vmem:[%s2 + $0xa60] sm:$0xff]
  %v364 = vld [vmem:[%s2 + $0xa68] sm:$0xff]
  %v365 = vld [vmem:[%s2 + $0xa70] sm:$0xff]
  %v366 = vld [vmem:[%s2 + $0xa78] sm:$0xff]
  %v367 = vld [vmem:[%s2 + $0xa80] sm:$0xff]
  %v368 = vld [vmem:[%s2 + $0xa88] sm:$0xff]
  %v369 = vld [vmem:[%s2 + $0xa90] sm:$0xff]
  %v370 = vld [vmem:[%s2 + $0xa98] sm:$0xff]
  %v371 = vld [vmem:[%s2 + $0xaa0] sm:$0xff]
  %v372 = vld [vmem:[%s2 + $0xaa8] sm:$0xff]
  %v373 = vld [vmem:[%s2 + $0xab0] sm:$0xff]
  %v374 = vld [vmem:[%s2 + $0xab8] sm:$0xff]
  %v375 = vld [vmem:[%s2 + $0xac0] sm:$0xff]
  %v376 = vld [vmem:[%s2 + $0xac8] sm:$0xff]
  %v377 = vld [vmem:[%s2 + $0xad0] sm:$0xff]
  %v378 = vld [vmem:[%s2 + $0xad8] sm:$0xff]
  %v379 = vld [vmem:[%s2 + $0xae0] sm:$0xff]
  %v380 = vld [vmem:[%s2 + $0xae8] sm:$0xff]
  %v381 = vld [vmem:[%s2 + $0xaf0] sm:$0xff]
  %v382 = vld [vmem:[%s2 + $0xaf8] sm:$0xff]
  %v383 = vld [vmem:[%s2 + $0xb00] sm:$0xff]
  %v384 = vld [vmem:[%s2 + $0xb08] sm:$0xff]
  %v385 = vld [vmem:[%s2 + $0xb10] sm:$0xff]
  %v386 = vld [vmem:[%s2 + $0xb18] sm:$0xff]
  %v387 = vld [vmem:[%s2 + $0xb20] sm:$0xff]
  %v388 = vld [vmem:[%s2 + $0xb28] sm:$0xff]
  %v389 = vld [vmem:[%s2 + $0xb30] sm:$0xff]
  %v390 = vld [vmem:[%s2 + $0xb38] sm:$0xff]
  %v391 = vld [vmem:[%s2 + $0xb40] sm:$0xff]
  %v392 = vld [vmem:[%s2 + $0xb48] sm:$0xff]
  %v393 = vld [vmem:[%s2 + $0xb50] sm:$0xff]
  %v394 = vld [vmem:[%s2 + $0xb58] sm:$0xff]
  %v395 = vld [vmem:[%s2 + $0xb60] sm:$0xff]
  %v396 = vld [vmem:[%s2 + $0xb68] sm:$0xff]
  %v397 = vld [vmem:[%s2 + $0xb70] sm:$0xff]
  %v398 = vld [vmem:[%s2 + $0xb78] sm:$0xff]
  %v399 = vld [vmem:[%s2 + $0xb80] sm:$0xff]
  %v400 = vld [vmem:[%s2 + $0xb88] sm:$0xff]
  %v401 = vld [vmem:[%s2 + $0xb90] sm:$0xff]
  %v402 = vld [vmem:[%s2 + $0xb98] sm:$0xff]
  %v403 = vld [vmem:[%s2 + $0xba0] sm:$0xff]
  %v404 = vld [vmem:[%s2 + $0xba8] sm:$0xff]
  %v405 = vld [vmem:[%s2 + $0xbb0] sm:$0xff]
  %v406 = vld [vmem:[%s2 + $0xbb8] sm:$0xff]
  %v407 = vld [vmem:[%s2 + $0xbc0] sm:$0xff]
  %v408 = vld [vmem:[%s2 + $0xbc8] sm:$0xff]
  %v409 = vld [vmem:[%s2 + $0xbd0] sm:$0xff]
  %v410 = vld [vmem:[%s2 + $0xbd8] sm:$0xff]
  %v411 = vld [vmem:[%s2 + $0xbe0] sm:$0xff]
  %v412 = vld [vmem:[%s2 + $0xbe8] sm:$0xff]
  %v413 = vld [vmem:[%s2 + $0xbf0] sm:$0xff]
  %v414 = vld [vmem:[%s2 + $0xbf8] sm:$0xff]
  %v415 = vld [vmem:[%s2 + $0xc00] sm:$0xff]
  %v416 = vld [vmem:[%s2 + $0xc08] sm:$0xff]
  %v417 = vld [vmem:[%s2 + $0xc10] sm:$0xff]
  %v418 = vld [vmem:[%s2 + $0xc18] sm:$0xff]
  %v419 = vld [vmem:[%s2 + $0xc20] sm:$0xff]
  %v420 = vld [vmem:[%s2 + $0xc28] sm:$0xff]
  %v421 = vld [vmem:[%s2 + $0xc30] sm:$0xff]
  %v422 = vld [vmem:[%s2 + $0xc38] sm:$0xff]
  %v423 = vld [vmem:[%s2 + $0xc40] sm:$0xff]
  %v424 = vld [vmem:[%s2 + $0xc48] sm:$0xff]
  %v425 = vld [vmem:[%s2 + $0xc50] sm:$0xff]
  %v426 = vld [vmem:[%s2 + $0xc58] sm:$0xff]
  %v427 = vld [vmem:[%s2 + $0xc60] sm:$0xff]
  %v428 = vld [vmem:[%s2 + $0xc68] sm:$0xff]
  %v429 = vld [vmem:[%s2 + $0xc70] sm:$0xff]
  %v430 = vld [vmem:[%s2 + $0xc78] sm:$0xff]
  %v431 = vld [vmem:[%s2 + $0xc80] sm:$0xff]
  %v432 = vld [vmem:[%s2 + $0xc88] sm:$0xff]
  %v433 = vld [vmem:[%s2 + $0xc90] sm:$0xff]
  %v434 = vld [vmem:[%s2 + $0xc98] sm:$0xff]
  %v435 = vld [vmem:[%s2 + $0xca0] sm:$0xff]
  %v436 = vld [vmem:[%s2 + $0xca8] sm:$0xff]
  %v437 = vld [vmem:[%s2 + $0xcb0] sm:$0xff]
  %v438 = vld [vmem:[%s2 + $0xcb8] sm:$0xff]
  %v439 = vld [vmem:[%s2 + $0xcc0] sm:$0xff]
  %v440 = vld [vmem:[%s2 + $0xcc8] sm:$0xff]
  %v441 = vld [vmem:[%s2 + $0xcd0] sm:$0xff]
  %v442 = vld [vmem:[%s2 + $0xcd8] sm:$0xff]
  %v443 = vld [vmem:[%s2 + $0xce0] sm:$0xff]
  %v444 = vld [vmem:[%s2 + $0xce8] sm:$0xff]
  %v445 = vld [vmem:[%s2 + $0xcf0] sm:$0xff]
  %v446 = vld [vmem:[%s2 + $0xcf8] sm:$0xff]
  %v447 = vld [vmem:[%s3] sm:$0xf]
  %v449 = vlaneseq
  %v450 = vshrl.u32 %v449, 7
  %v451 = vsub.s32 0, %v450
  %v452 = vrot.slane %v447, %v451
  %v453 = vlaneseq
  %v454 = vshrl.u32 %v453, 7
  %v455 = vsub.s32 1, %v454
  %v456 = vrot.slane %v447, %v455
  %v457 = vlaneseq
  %v458 = vshrl.u32 %v457, 7
  %v459 = vsub.s32 2, %v458
  %v460 = vrot.slane %v447, %v459
  %v461 = vlaneseq
  %v462 = vshrl.u32 %v461, 7
  %v463 = vsub.s32 3, %v462
  %v464 = vrot.slane %v447, %v463
  %v476 = vunpack.c.l.b16 %v24
  %v477 = vunpack.c.h.b16 %v24
  %v478 = vunpack.c.l.b16 %v25
  %v479 = vunpack.c.h.b16 %v25
  %v480 = vunpack.c.l.b16 %v26
  %v481 = vunpack.c.h.b16 %v26
  %v482 = vunpack.c.l.b16 %v27
  %v483 = vunpack.c.h.b16 %v27
  %v484 = vunpack.c.l.b16 %v28
  %v485 = vunpack.c.h.b16 %v28
  %v486 = vunpack.c.l.b16 %v29
  %v487 = vunpack.c.h.b16 %v29
  %v488 = vunpack.c.l.b16 %v30
  %v489 = vpack.c.b16 %v476, %v476
  %v490 = vpack.c.b16 %v477, %v477
  %v491 = vpack.c.b16 %v478, %v478
  %v492 = vpack.c.b16 %v479, %v479
  %v493 = vpack.c.b16 %v480, %v480
  %v494 = vpack.c.b16 %v481, %v481
  %v495 = vpack.c.b16 %v482, %v482
  %v496 = vpack.c.b16 %v483, %v483
  %v497 = vpack.c.b16 %v484, %v484
  %v498 = vpack.c.b16 %v485, %v485
  %v499 = vpack.c.b16 %v486, %v486
  %v500 = vpack.c.b16 %v487, %v487
  %v501 = vpack.c.b16 %v488, %v488
  %v931 = vunpack.c.l.b16 %v31
  %v932 = vunpack.c.h.b16 %v31
  %v933 = vunpack.c.l.b16 %v32
  %v934 = vunpack.c.h.b16 %v32
  %v935 = vunpack.c.l.b16 %v33
  %v936 = vunpack.c.h.b16 %v33
  %v937 = vunpack.c.l.b16 %v34
  %v938 = vunpack.c.h.b16 %v34
  %v939 = vunpack.c.l.b16 %v35
  %v940 = vunpack.c.h.b16 %v35
  %v941 = vunpack.c.l.b16 %v36
  %v942 = vunpack.c.h.b16 %v36
  %v943 = vunpack.c.l.b16 %v37
  %v944 = vunpack.c.h.b16 %v37
  %v945 = vunpack.c.l.b16 %v38
  %v946 = vunpack.c.h.b16 %v38
  %v947 = vunpack.c.l.b16 %v39
  %v948 = vunpack.c.h.b16 %v39
  %v949 = vunpack.c.l.b16 %v40
  %v950 = vunpack.c.h.b16 %v40
  %v951 = vunpack.c.l.b16 %v41
  %v952 = vunpack.c.h.b16 %v41
  %v953 = vunpack.c.l.b16 %v42
  %v954 = vunpack.c.h.b16 %v42
  %v955 = vunpack.c.l.b16 %v43
  %v956 = vunpack.c.h.b16 %v43
  %v957 = vunpack.c.l.b16 %v44
  %v958 = vunpack.c.h.b16 %v44
  %v959 = vunpack.c.l.b16 %v45
  %v960 = vunpack.c.h.b16 %v45
  %v961 = vunpack.c.l.b16 %v46
  %v962 = vunpack.c.h.b16 %v46
  %v963 = vunpack.c.l.b16 %v47
  %v964 = vunpack.c.h.b16 %v47
  %v965 = vunpack.c.l.b16 %v48
  %v966 = vunpack.c.h.b16 %v48
  %v967 = vunpack.c.l.b16 %v49
  %v968 = vunpack.c.h.b16 %v49
  %v969 = vunpack.c.l.b16 %v50
  %v970 = vunpack.c.h.b16 %v50
  %v971 = vunpack.c.l.b16 %v51
  %v972 = vunpack.c.h.b16 %v51
  %v973 = vunpack.c.l.b16 %v52
  %v974 = vunpack.c.h.b16 %v52
  %v975 = vunpack.c.l.b16 %v53
  %v976 = vunpack.c.h.b16 %v53
  %v977 = vunpack.c.l.b16 %v54
  %v978 = vunpack.c.h.b16 %v54
  %v979 = vunpack.c.l.b16 %v55
  %v980 = vunpack.c.h.b16 %v55
  %v981 = vunpack.c.l.b16 %v56
  %v982 = vunpack.c.h.b16 %v56
  %v983 = vunpack.c.l.b16 %v57
  %v984 = vunpack.c.h.b16 %v57
  %v985 = vunpack.c.l.b16 %v58
  %v986 = vunpack.c.h.b16 %v58
  %v987 = vunpack.c.l.b16 %v59
  %v988 = vunpack.c.h.b16 %v59
  %v989 = vunpack.c.l.b16 %v60
  %v990 = vunpack.c.h.b16 %v60
  %v991 = vunpack.c.l.b16 %v61
  %v992 = vunpack.c.h.b16 %v61
  %v993 = vunpack.c.l.b16 %v62
  %v994 = vunpack.c.h.b16 %v62
  %v995 = vunpack.c.l.b16 %v63
  %v996 = vunpack.c.h.b16 %v63
  %v997 = vunpack.c.l.b16 %v64
  %v998 = vunpack.c.h.b16 %v64
  %v999 = vunpack.c.l.b16 %v65
  %v1000 = vunpack.c.h.b16 %v65
  %v1001 = vunpack.c.l.b16 %v66
  %v1002 = vunpack.c.h.b16 %v66
  %v1003 = vunpack.c.l.b16 %v67
  %v1004 = vunpack.c.h.b16 %v67
  %v1005 = vunpack.c.l.b16 %v68
  %v1006 = vunpack.c.h.b16 %v68
  %v1007 = vunpack.c.l.b16 %v69
  %v1008 = vunpack.c.h.b16 %v69
  %v1009 = vunpack.c.l.b16 %v70
  %v1010 = vunpack.c.h.b16 %v70
  %v1011 = vunpack.c.l.b16 %v71
  %v1012 = vunpack.c.h.b16 %v71
  %v1013 = vunpack.c.l.b16 %v72
  %v1014 = vunpack.c.h.b16 %v72
  %v1015 = vunpack.c.l.b16 %v73
  %v1016 = vunpack.c.h.b16 %v73
  %v1017 = vunpack.c.l.b16 %v74
  %v1018 = vunpack.c.h.b16 %v74
  %v1019 = vunpack.c.l.b16 %v75
  %v1020 = vunpack.c.h.b16 %v75
  %v1021 = vunpack.c.l.b16 %v76
  %v1022 = vunpack.c.h.b16 %v76
  %v1023 = vunpack.c.l.b16 %v77
  %v1024 = vunpack.c.h.b16 %v77
  %v1025 = vunpack.c.l.b16 %v78
  %v1026 = vunpack.c.h.b16 %v78
  %v1027 = vunpack.c.l.b16 %v79
  %v1028 = vunpack.c.h.b16 %v79
  %v1029 = vunpack.c.l.b16 %v80
  %v1030 = vunpack.c.h.b16 %v80
  %v1031 = vunpack.c.l.b16 %v81
  %v1032 = vunpack.c.h.b16 %v81
  %v1033 = vunpack.c.l.b16 %v82
  %v1034 = vunpack.c.h.b16 %v82
  %v1035 = vunpack.c.l.b16 %v83
  %v1036 = vunpack.c.h.b16 %v83
  %v1037 = vunpack.c.l.b16 %v84
  %v1038 = vunpack.c.h.b16 %v84
  %v1039 = vunpack.c.l.b16 %v85
  %v1040 = vunpack.c.h.b16 %v85
  %v1041 = vunpack.c.l.b16 %v86
  %v1042 = vunpack.c.h.b16 %v86
  %v1043 = vunpack.c.l.b16 %v87
  %v1044 = vunpack.c.h.b16 %v87
  %v1045 = vunpack.c.l.b16 %v88
  %v1046 = vunpack.c.h.b16 %v88
  %v1047 = vunpack.c.l.b16 %v89
  %v1048 = vunpack.c.h.b16 %v89
  %v1049 = vunpack.c.l.b16 %v90
  %v1050 = vunpack.c.h.b16 %v90
  %v1051 = vunpack.c.l.b16 %v91
  %v1052 = vunpack.c.h.b16 %v91
  %v1053 = vunpack.c.l.b16 %v92
  %v1054 = vunpack.c.h.b16 %v92
  %v1055 = vunpack.c.l.b16 %v93
  %v1056 = vunpack.c.h.b16 %v93
  %v1057 = vunpack.c.l.b16 %v94
  %v1058 = vunpack.c.h.b16 %v94
  %v1059 = vunpack.c.l.b16 %v95
  %v1060 = vunpack.c.h.b16 %v95
  %v1061 = vunpack.c.l.b16 %v96
  %v1062 = vunpack.c.h.b16 %v96
  %v1063 = vunpack.c.l.b16 %v97
  %v1064 = vunpack.c.h.b16 %v97
  %v1065 = vunpack.c.l.b16 %v98
  %v1066 = vunpack.c.h.b16 %v98
  %v1067 = vunpack.c.l.b16 %v99
  %v1068 = vunpack.c.h.b16 %v99
  %v1069 = vunpack.c.l.b16 %v100
  %v1070 = vunpack.c.h.b16 %v100
  %v1071 = vunpack.c.l.b16 %v101
  %v1072 = vunpack.c.h.b16 %v101
  %v1073 = vunpack.c.l.b16 %v102
  %v1074 = vunpack.c.h.b16 %v102
  %v1075 = vunpack.c.l.b16 %v103
  %v1076 = vunpack.c.h.b16 %v103
  %v1077 = vunpack.c.l.b16 %v104
  %v1078 = vunpack.c.h.b16 %v104
  %v1079 = vunpack.c.l.b16 %v105
  %v1080 = vunpack.c.h.b16 %v105
  %v1081 = vunpack.c.l.b16 %v106
  %v1082 = vunpack.c.h.b16 %v106
  %v1083 = vunpack.c.l.b16 %v107
  %v1084 = vunpack.c.h.b16 %v107
  %v1085 = vunpack.c.l.b16 %v108
  %v1086 = vunpack.c.h.b16 %v108
  %v1087 = vunpack.c.l.b16 %v109
  %v1088 = vunpack.c.h.b16 %v109
  %v1089 = vunpack.c.l.b16 %v110
  %v1090 = vunpack.c.h.b16 %v110
  %v1091 = vunpack.c.l.b16 %v111
  %v1092 = vunpack.c.h.b16 %v111
  %v1093 = vunpack.c.l.b16 %v112
  %v1094 = vunpack.c.h.b16 %v112
  %v1095 = vunpack.c.l.b16 %v113
  %v1096 = vunpack.c.h.b16 %v113
  %v1097 = vunpack.c.l.b16 %v114
  %v1098 = vunpack.c.h.b16 %v114
  %v1099 = vunpack.c.l.b16 %v115
  %v1100 = vunpack.c.h.b16 %v115
  %v1101 = vunpack.c.l.b16 %v116
  %v1102 = vunpack.c.h.b16 %v116
  %v1103 = vunpack.c.l.b16 %v117
  %v1104 = vunpack.c.h.b16 %v117
  %v1105 = vunpack.c.l.b16 %v118
  %v1106 = vunpack.c.h.b16 %v118
  %v1107 = vunpack.c.l.b16 %v119
  %v1108 = vunpack.c.h.b16 %v119
  %v1109 = vunpack.c.l.b16 %v120
  %v1110 = vunpack.c.h.b16 %v120
  %v1111 = vunpack.c.l.b16 %v121
  %v1112 = vunpack.c.h.b16 %v121
  %v1113 = vunpack.c.l.b16 %v122
  %v1114 = vunpack.c.h.b16 %v122
  %v1115 = vunpack.c.l.b16 %v123
  %v1116 = vunpack.c.h.b16 %v123
  %v1117 = vunpack.c.l.b16 %v124
  %v1118 = vunpack.c.h.b16 %v124
  %v1119 = vunpack.c.l.b16 %v125
  %v1120 = vunpack.c.h.b16 %v125
  %v1121 = vunpack.c.l.b16 %v126
  %v1122 = vunpack.c.h.b16 %v126
  %v1123 = vunpack.c.l.b16 %v127
  %v1124 = vunpack.c.h.b16 %v127
  %v1125 = vunpack.c.l.b16 %v128
  %v1126 = vunpack.c.h.b16 %v128
  %v1127 = vunpack.c.l.b16 %v129
  %v1128 = vunpack.c.h.b16 %v129
  %v1129 = vunpack.c.l.b16 %v130
  %v1130 = vunpack.c.h.b16 %v130
  %v1131 = vunpack.c.l.b16 %v131
  %v1132 = vunpack.c.h.b16 %v131
  %v1133 = vunpack.c.l.b16 %v132
  %v1134 = vunpack.c.h.b16 %v132
  %v1135 = vunpack.c.l.b16 %v133
  %v1136 = vunpack.c.h.b16 %v133
  %v1137 = vunpack.c.l.b16 %v134
  %v1138 = vunpack.c.h.b16 %v134
  %v1139 = vunpack.c.l.b16 %v135
  %v1140 = vunpack.c.h.b16 %v135
  %v1141 = vunpack.c.l.b16 %v136
  %v1142 = vunpack.c.h.b16 %v136
  %v1143 = vunpack.c.l.b16 %v137
  %v1144 = vunpack.c.h.b16 %v137
  %v1145 = vunpack.c.l.b16 %v138
  %v1146 = vunpack.c.h.b16 %v138
  %v1147 = vunpack.c.l.b16 %v139
  %v1148 = vunpack.c.h.b16 %v139
  %v1149 = vunpack.c.l.b16 %v140
  %v1150 = vunpack.c.h.b16 %v140
  %v1151 = vunpack.c.l.b16 %v141
  %v1152 = vunpack.c.h.b16 %v141
  %v1153 = vunpack.c.l.b16 %v142
  %v1154 = vunpack.c.h.b16 %v142
  %v1155 = vunpack.c.l.b16 %v143
  %v1156 = vunpack.c.h.b16 %v143
  %v1157 = vunpack.c.l.b16 %v144
  %v1158 = vunpack.c.h.b16 %v144
  %v1159 = vunpack.c.l.b16 %v145
  %v1160 = vunpack.c.h.b16 %v145
  %v1161 = vunpack.c.l.b16 %v146
  %v1162 = vunpack.c.h.b16 %v146
  %v1163 = vunpack.c.l.b16 %v147
  %v1164 = vunpack.c.h.b16 %v147
  %v1165 = vunpack.c.l.b16 %v148
  %v1166 = vunpack.c.h.b16 %v148
  %v1167 = vunpack.c.l.b16 %v149
  %v1168 = vunpack.c.h.b16 %v149
  %v1169 = vunpack.c.l.b16 %v150
  %v1170 = vunpack.c.h.b16 %v150
  %v1171 = vunpack.c.l.b16 %v151
  %v1172 = vunpack.c.h.b16 %v151
  %v1173 = vunpack.c.l.b16 %v152
  %v1174 = vunpack.c.h.b16 %v152
  %v1175 = vunpack.c.l.b16 %v153
  %v1176 = vunpack.c.h.b16 %v153
  %v1177 = vunpack.c.l.b16 %v154
  %v1178 = vunpack.c.h.b16 %v154
  %v1179 = vunpack.c.l.b16 %v155
  %v1180 = vunpack.c.h.b16 %v155
  %v1181 = vunpack.c.l.b16 %v156
  %v1182 = vunpack.c.h.b16 %v156
  %v1183 = vunpack.c.l.b16 %v157
  %v1184 = vunpack.c.h.b16 %v157
  %v1185 = vunpack.c.l.b16 %v158
  %v1186 = vunpack.c.h.b16 %v158
  %v1187 = vunpack.c.l.b16 %v159
  %v1188 = vunpack.c.h.b16 %v159
  %v1189 = vunpack.c.l.b16 %v160
  %v1190 = vunpack.c.h.b16 %v160
  %v1191 = vunpack.c.l.b16 %v161
  %v1192 = vunpack.c.h.b16 %v161
  %v1193 = vunpack.c.l.b16 %v162
  %v1194 = vunpack.c.h.b16 %v162
  %v1195 = vunpack.c.l.b16 %v163
  %v1196 = vunpack.c.h.b16 %v163
  %v1197 = vunpack.c.l.b16 %v164
  %v1198 = vunpack.c.h.b16 %v164
  %v1199 = vunpack.c.l.b16 %v165
  %v1200 = vunpack.c.h.b16 %v165
  %v1201 = vunpack.c.l.b16 %v166
  %v1202 = vunpack.c.h.b16 %v166
  %v1203 = vunpack.c.l.b16 %v167
  %v1204 = vunpack.c.h.b16 %v167
  %v1205 = vunpack.c.l.b16 %v168
  %v1206 = vunpack.c.h.b16 %v168
  %v1207 = vunpack.c.l.b16 %v169
  %v1208 = vunpack.c.h.b16 %v169
  %v1209 = vunpack.c.l.b16 %v170
  %v1210 = vunpack.c.h.b16 %v170
  %v1211 = vunpack.c.l.b16 %v171
  %v1212 = vunpack.c.h.b16 %v171
  %v1213 = vunpack.c.l.b16 %v172
  %v1214 = vunpack.c.h.b16 %v172
  %v1215 = vunpack.c.l.b16 %v173
  %v1216 = vunpack.c.h.b16 %v173
  %v1217 = vunpack.c.l.b16 %v174
  %v1218 = vunpack.c.h.b16 %v174
  %v1219 = vunpack.c.l.b16 %v175
  %v1220 = vunpack.c.h.b16 %v175
  %v1221 = vunpack.c.l.b16 %v176
  %v1222 = vunpack.c.h.b16 %v176
  %v1223 = vunpack.c.l.b16 %v177
  %v1224 = vunpack.c.h.b16 %v177
  %v1225 = vunpack.c.l.b16 %v178
  %v1226 = vunpack.c.h.b16 %v178
  %v1227 = vunpack.c.l.b16 %v179
  %v1228 = vunpack.c.h.b16 %v179
  %v1229 = vunpack.c.l.b16 %v180
  %v1230 = vunpack.c.h.b16 %v180
  %v1231 = vunpack.c.l.b16 %v181
  %v1232 = vunpack.c.h.b16 %v181
  %v1233 = vunpack.c.l.b16 %v182
  %v1234 = vunpack.c.h.b16 %v182
  %v1235 = vunpack.c.l.b16 %v183
  %v1236 = vunpack.c.h.b16 %v183
  %v1237 = vunpack.c.l.b16 %v184
  %v1238 = vunpack.c.h.b16 %v184
  %v1239 = vunpack.c.l.b16 %v185
  %v1240 = vunpack.c.h.b16 %v185
  %v1241 = vunpack.c.l.b16 %v186
  %v1242 = vunpack.c.h.b16 %v186
  %v1243 = vunpack.c.l.b16 %v187
  %v1244 = vunpack.c.h.b16 %v187
  %v1245 = vunpack.c.l.b16 %v188
  %v1246 = vunpack.c.h.b16 %v188
  %v1247 = vunpack.c.l.b16 %v189
  %v1248 = vunpack.c.h.b16 %v189
  %v1249 = vunpack.c.l.b16 %v190
  %v1250 = vunpack.c.h.b16 %v190
  %v1251 = vunpack.c.l.b16 %v191
  %v1252 = vunpack.c.h.b16 %v191
  %v1253 = vunpack.c.l.b16 %v192
  %v1254 = vunpack.c.h.b16 %v192
  %v1255 = vunpack.c.l.b16 %v193
  %v1256 = vunpack.c.h.b16 %v193
  %v1257 = vunpack.c.l.b16 %v194
  %v1258 = vunpack.c.h.b16 %v194
  %v1259 = vunpack.c.l.b16 %v195
  %v1260 = vunpack.c.h.b16 %v195
  %v1261 = vunpack.c.l.b16 %v196
  %v1262 = vunpack.c.h.b16 %v196
  %v1263 = vunpack.c.l.b16 %v197
  %v1264 = vunpack.c.h.b16 %v197
  %v1265 = vunpack.c.l.b16 %v198
  %v1266 = vunpack.c.h.b16 %v198
  %v1267 = vunpack.c.l.b16 %v199
  %v1268 = vunpack.c.h.b16 %v199
  %v1269 = vunpack.c.l.b16 %v200
  %v1270 = vunpack.c.h.b16 %v200
  %v1271 = vunpack.c.l.b16 %v201
  %v1272 = vunpack.c.h.b16 %v201
  %v1273 = vunpack.c.l.b16 %v202
  %v1274 = vunpack.c.h.b16 %v202
  %v1275 = vunpack.c.l.b16 %v203
  %v1276 = vunpack.c.h.b16 %v203
  %v1277 = vunpack.c.l.b16 %v204
  %v1278 = vunpack.c.h.b16 %v204
  %v1279 = vunpack.c.l.b16 %v205
  %v1280 = vunpack.c.h.b16 %v205
  %v1281 = vunpack.c.l.b16 %v206
  %v1282 = vunpack.c.h.b16 %v206
  %v1283 = vunpack.c.l.b16 %v207
  %v1284 = vunpack.c.h.b16 %v207
  %v1285 = vunpack.c.l.b16 %v208
  %v1286 = vunpack.c.h.b16 %v208
  %v1287 = vunpack.c.l.b16 %v209
  %v1288 = vunpack.c.h.b16 %v209
  %v1289 = vunpack.c.l.b16 %v210
  %v1290 = vunpack.c.h.b16 %v210
  %v1291 = vunpack.c.l.b16 %v211
  %v1292 = vunpack.c.h.b16 %v211
  %v1293 = vunpack.c.l.b16 %v212
  %v1294 = vunpack.c.h.b16 %v212
  %v1295 = vunpack.c.l.b16 %v213
  %v1296 = vunpack.c.h.b16 %v213
  %v1297 = vunpack.c.l.b16 %v214
  %v1298 = vunpack.c.h.b16 %v214
  %v1299 = vunpack.c.l.b16 %v215
  %v1300 = vunpack.c.h.b16 %v215
  %v1301 = vunpack.c.l.b16 %v216
  %v1302 = vunpack.c.h.b16 %v216
  %v1303 = vunpack.c.l.b16 %v217
  %v1304 = vunpack.c.h.b16 %v217
  %v1305 = vunpack.c.l.b16 %v218
  %v1306 = vunpack.c.h.b16 %v218
  %v1307 = vunpack.c.l.b16 %v219
  %v1308 = vunpack.c.h.b16 %v219
  %v1309 = vunpack.c.l.b16 %v220
  %v1310 = vunpack.c.h.b16 %v220
  %v1311 = vunpack.c.l.b16 %v221
  %v1312 = vunpack.c.h.b16 %v221
  %v1313 = vunpack.c.l.b16 %v222
  %v1314 = vunpack.c.h.b16 %v222
  %v1315 = vunpack.c.l.b16 %v223
  %v1316 = vunpack.c.h.b16 %v223
  %v1317 = vunpack.c.l.b16 %v224
  %v1318 = vunpack.c.h.b16 %v224
  %v1319 = vunpack.c.l.b16 %v225
  %v1320 = vunpack.c.h.b16 %v225
  %v1321 = vunpack.c.l.b16 %v226
  %v1322 = vunpack.c.h.b16 %v226
  %v1323 = vunpack.c.l.b16 %v227
  %v1324 = vunpack.c.h.b16 %v227
  %v1325 = vunpack.c.l.b16 %v228
  %v1326 = vunpack.c.h.b16 %v228
  %v1327 = vunpack.c.l.b16 %v229
  %v1328 = vunpack.c.h.b16 %v229
  %v1329 = vunpack.c.l.b16 %v230
  %v1330 = vunpack.c.h.b16 %v230
  %v1331 = vunpack.c.l.b16 %v231
  %v1332 = vunpack.c.h.b16 %v231
  %v1333 = vunpack.c.l.b16 %v232
  %v1334 = vunpack.c.h.b16 %v232
  %v1335 = vunpack.c.l.b16 %v233
  %v1336 = vunpack.c.h.b16 %v233
  %v1337 = vunpack.c.l.b16 %v234
  %v1338 = vunpack.c.h.b16 %v234
  %v1339 = vunpack.c.l.b16 %v235
  %v1340 = vunpack.c.h.b16 %v235
  %v1341 = vunpack.c.l.b16 %v236
  %v1342 = vunpack.c.h.b16 %v236
  %v1343 = vunpack.c.l.b16 %v237
  %v1344 = vunpack.c.h.b16 %v237
  %v1345 = vunpack.c.l.b16 %v238
  %v1346 = vunpack.c.h.b16 %v238
  %v1347 = vunpack.c.l.b16 %v239
  %v1348 = vunpack.c.h.b16 %v239
  %v1349 = vunpack.c.l.b16 %v240
  %v1350 = vunpack.c.h.b16 %v240
  %v1351 = vunpack.c.l.b16 %v241
  %v1352 = vunpack.c.h.b16 %v241
  %v1353 = vunpack.c.l.b16 %v242
  %v1354 = vunpack.c.h.b16 %v242
  %v1355 = vunpack.c.l.b16 %v243
  %v1356 = vunpack.c.h.b16 %v243
  %v1357 = vunpack.c.l.b16 %v244
  %v1358 = vunpack.c.h.b16 %v244
  %v1359 = vunpack.c.l.b16 %v245
  %v1360 = vunpack.c.h.b16 %v245
  %v1361 = vunpack.c.l.b16 %v246
  %v1362 = vunpack.c.h.b16 %v246
  %v1363 = vunpack.c.l.b16 %v247
  %v1364 = vunpack.c.h.b16 %v247
  %v1365 = vunpack.c.l.b16 %v248
  %v1366 = vunpack.c.h.b16 %v248
  %v1367 = vunpack.c.l.b16 %v249
  %v1368 = vunpack.c.h.b16 %v249
  %v1369 = vunpack.c.l.b16 %v250
  %v1370 = vunpack.c.h.b16 %v250
  %v1371 = vunpack.c.l.b16 %v251
  %v1372 = vunpack.c.h.b16 %v251
  %v1373 = vunpack.c.l.b16 %v252
  %v1374 = vunpack.c.h.b16 %v252
  %v1375 = vunpack.c.l.b16 %v253
  %v1376 = vunpack.c.h.b16 %v253
  %v1377 = vunpack.c.l.b16 %v254
  %v1378 = vunpack.c.h.b16 %v254
  %v1379 = vunpack.c.l.b16 %v255
  %v1380 = vunpack.c.h.b16 %v255
  %v1381 = vunpack.c.l.b16 %v256
  %v1382 = vunpack.c.h.b16 %v256
  %v1383 = vunpack.c.l.b16 %v257
  %v1384 = vunpack.c.h.b16 %v257
  %v1385 = vunpack.c.l.b16 %v258
  %v1386 = vunpack.c.h.b16 %v258
  %v1387 = vunpack.c.l.b16 %v259
  %v1388 = vunpack.c.h.b16 %v259
  %v1389 = vunpack.c.l.b16 %v260
  %v1390 = vunpack.c.h.b16 %v260
  %v1391 = vunpack.c.l.b16 %v261
  %v1392 = vunpack.c.h.b16 %v261
  %v1393 = vunpack.c.l.b16 %v262
  %v1394 = vunpack.c.h.b16 %v262
  %v1395 = vunpack.c.l.b16 %v263
  %v1396 = vunpack.c.h.b16 %v263
  %v1397 = vunpack.c.l.b16 %v264
  %v1398 = vunpack.c.h.b16 %v264
  %v1399 = vunpack.c.l.b16 %v265
  %v1400 = vunpack.c.h.b16 %v265
  %v1401 = vunpack.c.l.b16 %v266
  %v1402 = vunpack.c.h.b16 %v266
  %v1403 = vunpack.c.l.b16 %v267
  %v1404 = vunpack.c.h.b16 %v267
  %v1405 = vunpack.c.l.b16 %v268
  %v1406 = vunpack.c.h.b16 %v268
  %v1407 = vunpack.c.l.b16 %v269
  %v1408 = vunpack.c.h.b16 %v269
  %v1409 = vunpack.c.l.b16 %v270
  %v1410 = vunpack.c.h.b16 %v270
  %v1411 = vunpack.c.l.b16 %v271
  %v1412 = vunpack.c.h.b16 %v271
  %v1413 = vunpack.c.l.b16 %v272
  %v1414 = vunpack.c.h.b16 %v272
  %v1415 = vunpack.c.l.b16 %v273
  %v1416 = vunpack.c.h.b16 %v273
  %v1417 = vunpack.c.l.b16 %v274
  %v1418 = vunpack.c.h.b16 %v274
  %v1419 = vunpack.c.l.b16 %v275
  %v1420 = vunpack.c.h.b16 %v275
  %v1421 = vunpack.c.l.b16 %v276
  %v1422 = vunpack.c.h.b16 %v276
  %v1423 = vunpack.c.l.b16 %v277
  %v1424 = vunpack.c.h.b16 %v277
  %v1425 = vunpack.c.l.b16 %v278
  %v1426 = vunpack.c.h.b16 %v278
  %v1427 = vunpack.c.l.b16 %v279
  %v1428 = vunpack.c.h.b16 %v279
  %v1429 = vunpack.c.l.b16 %v280
  %v1430 = vunpack.c.h.b16 %v280
  %v1431 = vunpack.c.l.b16 %v281
  %v1432 = vunpack.c.h.b16 %v281
  %v1433 = vunpack.c.l.b16 %v282
  %v1434 = vunpack.c.h.b16 %v282
  %v1435 = vunpack.c.l.b16 %v283
  %v1436 = vunpack.c.h.b16 %v283
  %v1437 = vunpack.c.l.b16 %v284
  %v1438 = vunpack.c.h.b16 %v284
  %v1439 = vunpack.c.l.b16 %v285
  %v1440 = vunpack.c.h.b16 %v285
  %v1441 = vunpack.c.l.b16 %v286
  %v1442 = vunpack.c.h.b16 %v286
  %v1443 = vunpack.c.l.b16 %v287
  %v1444 = vunpack.c.h.b16 %v287
  %v1445 = vunpack.c.l.b16 %v288
  %v1446 = vunpack.c.h.b16 %v288
  %v1447 = vunpack.c.l.b16 %v289
  %v1448 = vunpack.c.h.b16 %v289
  %v1449 = vunpack.c.l.b16 %v290
  %v1450 = vunpack.c.h.b16 %v290
  %v1451 = vunpack.c.l.b16 %v291
  %v1452 = vunpack.c.h.b16 %v291
  %v1453 = vunpack.c.l.b16 %v292
  %v1454 = vunpack.c.h.b16 %v292
  %v1455 = vunpack.c.l.b16 %v293
  %v1456 = vunpack.c.h.b16 %v293
  %v1457 = vunpack.c.l.b16 %v294
  %v1458 = vunpack.c.h.b16 %v294
  %v1459 = vunpack.c.l.b16 %v295
  %v1460 = vunpack.c.h.b16 %v295
  %v1461 = vunpack.c.l.b16 %v296
  %v1462 = vunpack.c.h.b16 %v296
  %v1463 = vunpack.c.l.b16 %v297
  %v1464 = vunpack.c.h.b16 %v297
  %v1465 = vunpack.c.l.b16 %v298
  %v1466 = vunpack.c.h.b16 %v298
  %v1467 = vunpack.c.l.b16 %v299
  %v1468 = vunpack.c.h.b16 %v299
  %v1469 = vunpack.c.l.b16 %v300
  %v1470 = vunpack.c.h.b16 %v300
  %v1471 = vunpack.c.l.b16 %v301
  %v1472 = vunpack.c.h.b16 %v301
  %v1473 = vunpack.c.l.b16 %v302
  %v1474 = vunpack.c.h.b16 %v302
  %v1475 = vunpack.c.l.b16 %v303
  %v1476 = vunpack.c.h.b16 %v303
  %v1477 = vunpack.c.l.b16 %v304
  %v1478 = vunpack.c.h.b16 %v304
  %v1479 = vunpack.c.l.b16 %v305
  %v1480 = vunpack.c.h.b16 %v305
  %v1481 = vunpack.c.l.b16 %v306
  %v1482 = vunpack.c.h.b16 %v306
  %v1483 = vunpack.c.l.b16 %v307
  %v1484 = vunpack.c.h.b16 %v307
  %v1485 = vunpack.c.l.b16 %v308
  %v1486 = vunpack.c.h.b16 %v308
  %v1487 = vunpack.c.l.b16 %v309
  %v1488 = vunpack.c.h.b16 %v309
  %v1489 = vunpack.c.l.b16 %v310
  %v1490 = vunpack.c.h.b16 %v310
  %v1491 = vunpack.c.l.b16 %v311
  %v1492 = vunpack.c.h.b16 %v311
  %v1493 = vunpack.c.l.b16 %v312
  %v1494 = vunpack.c.h.b16 %v312
  %v1495 = vunpack.c.l.b16 %v313
  %v1496 = vunpack.c.h.b16 %v313
  %v1497 = vunpack.c.l.b16 %v314
  %v1498 = vunpack.c.h.b16 %v314
  %v1499 = vunpack.c.l.b16 %v315
  %v1500 = vunpack.c.h.b16 %v315
  %v1501 = vunpack.c.l.b16 %v316
  %v1502 = vunpack.c.h.b16 %v316
  %v1503 = vunpack.c.l.b16 %v317
  %v1504 = vunpack.c.h.b16 %v317
  %v1505 = vunpack.c.l.b16 %v318
  %v1506 = vunpack.c.h.b16 %v318
  %v1507 = vunpack.c.l.b16 %v319
  %v1508 = vunpack.c.h.b16 %v319
  %v1509 = vunpack.c.l.b16 %v320
  %v1510 = vunpack.c.h.b16 %v320
  %v1511 = vunpack.c.l.b16 %v321
  %v1512 = vunpack.c.h.b16 %v321
  %v1513 = vunpack.c.l.b16 %v322
  %v1514 = vunpack.c.h.b16 %v322
  %v1515 = vunpack.c.l.b16 %v323
  %v1516 = vunpack.c.h.b16 %v323
  %v1517 = vunpack.c.l.b16 %v324
  %v1518 = vunpack.c.h.b16 %v324
  %v1519 = vunpack.c.l.b16 %v325
  %v1520 = vunpack.c.h.b16 %v325
  %v1521 = vunpack.c.l.b16 %v326
  %v1522 = vunpack.c.h.b16 %v326
  %v1523 = vunpack.c.l.b16 %v327
  %v1524 = vunpack.c.h.b16 %v327
  %v1525 = vunpack.c.l.b16 %v328
  %v1526 = vunpack.c.h.b16 %v328
  %v1527 = vunpack.c.l.b16 %v329
  %v1528 = vunpack.c.h.b16 %v329
  %v1529 = vunpack.c.l.b16 %v330
  %v1530 = vunpack.c.h.b16 %v330
  %v1531 = vunpack.c.l.b16 %v331
  %v1532 = vunpack.c.h.b16 %v331
  %v1533 = vunpack.c.l.b16 %v332
  %v1534 = vunpack.c.h.b16 %v332
  %v1535 = vunpack.c.l.b16 %v333
  %v1536 = vunpack.c.h.b16 %v333
  %v1537 = vunpack.c.l.b16 %v334
  %v1538 = vunpack.c.h.b16 %v334
  %v1539 = vunpack.c.l.b16 %v335
  %v1540 = vunpack.c.h.b16 %v335
  %v1541 = vunpack.c.l.b16 %v336
  %v1542 = vunpack.c.h.b16 %v336
  %v1543 = vunpack.c.l.b16 %v337
  %v1544 = vunpack.c.h.b16 %v337
  %v1545 = vunpack.c.l.b16 %v338
  %v1546 = vunpack.c.h.b16 %v338
  %v1547 = vunpack.c.l.b16 %v339
  %v1548 = vunpack.c.h.b16 %v339
  %v1549 = vunpack.c.l.b16 %v340
  %v1550 = vunpack.c.h.b16 %v340
  %v1551 = vunpack.c.l.b16 %v341
  %v1552 = vunpack.c.h.b16 %v341
  %v1553 = vunpack.c.l.b16 %v342
  %v1554 = vunpack.c.h.b16 %v342
  %v1555 = vunpack.c.l.b16 %v343
  %v1556 = vunpack.c.h.b16 %v343
  %v1557 = vunpack.c.l.b16 %v344
  %v1558 = vunpack.c.h.b16 %v344
  %v1559 = vunpack.c.l.b16 %v345
  %v1560 = vunpack.c.h.b16 %v345
  %v1561 = vunpack.c.l.b16 %v346
  %v1562 = vunpack.c.h.b16 %v346
  %v1563 = vunpack.c.l.b16 %v347
  %v1564 = vunpack.c.h.b16 %v347
  %v1565 = vunpack.c.l.b16 %v348
  %v1566 = vunpack.c.h.b16 %v348
  %v1567 = vunpack.c.l.b16 %v349
  %v1568 = vunpack.c.h.b16 %v349
  %v1569 = vunpack.c.l.b16 %v350
  %v1570 = vunpack.c.h.b16 %v350
  %v1571 = vunpack.c.l.b16 %v351
  %v1572 = vunpack.c.h.b16 %v351
  %v1573 = vunpack.c.l.b16 %v352
  %v1574 = vunpack.c.h.b16 %v352
  %v1575 = vunpack.c.l.b16 %v353
  %v1576 = vunpack.c.h.b16 %v353
  %v1577 = vunpack.c.l.b16 %v354
  %v1578 = vunpack.c.h.b16 %v354
  %v1579 = vunpack.c.l.b16 %v355
  %v1580 = vunpack.c.h.b16 %v355
  %v1581 = vunpack.c.l.b16 %v356
  %v1582 = vunpack.c.h.b16 %v356
  %v1583 = vunpack.c.l.b16 %v357
  %v1584 = vunpack.c.h.b16 %v357
  %v1585 = vunpack.c.l.b16 %v358
  %v1586 = vunpack.c.h.b16 %v358
  %v1587 = vunpack.c.l.b16 %v359
  %v1588 = vunpack.c.h.b16 %v359
  %v1589 = vunpack.c.l.b16 %v360
  %v1590 = vunpack.c.h.b16 %v360
  %v1591 = vunpack.c.l.b16 %v361
  %v1592 = vunpack.c.h.b16 %v361
  %v1593 = vunpack.c.l.b16 %v362
  %v1594 = vunpack.c.h.b16 %v362
  %v1595 = vunpack.c.l.b16 %v363
  %v1596 = vunpack.c.h.b16 %v363
  %v1597 = vunpack.c.l.b16 %v364
  %v1598 = vunpack.c.h.b16 %v364
  %v1599 = vunpack.c.l.b16 %v365
  %v1600 = vunpack.c.h.b16 %v365
  %v1601 = vunpack.c.l.b16 %v366
  %v1602 = vunpack.c.h.b16 %v366
  %v1603 = vunpack.c.l.b16 %v367
  %v1604 = vunpack.c.h.b16 %v367
  %v1605 = vunpack.c.l.b16 %v368
  %v1606 = vunpack.c.h.b16 %v368
  %v1607 = vunpack.c.l.b16 %v369
  %v1608 = vunpack.c.h.b16 %v369
  %v1609 = vunpack.c.l.b16 %v370
  %v1610 = vunpack.c.h.b16 %v370
  %v1611 = vunpack.c.l.b16 %v371
  %v1612 = vunpack.c.h.b16 %v371
  %v1613 = vunpack.c.l.b16 %v372
  %v1614 = vunpack.c.h.b16 %v372
  %v1615 = vunpack.c.l.b16 %v373
  %v1616 = vunpack.c.h.b16 %v373
  %v1617 = vunpack.c.l.b16 %v374
  %v1618 = vunpack.c.h.b16 %v374
  %v1619 = vunpack.c.l.b16 %v375
  %v1620 = vunpack.c.h.b16 %v375
  %v1621 = vunpack.c.l.b16 %v376
  %v1622 = vunpack.c.h.b16 %v376
  %v1623 = vunpack.c.l.b16 %v377
  %v1624 = vunpack.c.h.b16 %v377
  %v1625 = vunpack.c.l.b16 %v378
  %v1626 = vunpack.c.h.b16 %v378
  %v1627 = vunpack.c.l.b16 %v379
  %v1628 = vunpack.c.h.b16 %v379
  %v1629 = vunpack.c.l.b16 %v380
  %v1630 = vunpack.c.h.b16 %v380
  %v1631 = vunpack.c.l.b16 %v381
  %v1632 = vunpack.c.h.b16 %v381
  %v1633 = vunpack.c.l.b16 %v382
  %v1634 = vunpack.c.h.b16 %v382
  %v1635 = vunpack.c.l.b16 %v383
  %v1636 = vunpack.c.h.b16 %v383
  %v1637 = vunpack.c.l.b16 %v384
  %v1638 = vunpack.c.h.b16 %v384
  %v1639 = vunpack.c.l.b16 %v385
  %v1640 = vunpack.c.h.b16 %v385
  %v1641 = vunpack.c.l.b16 %v386
  %v1642 = vunpack.c.h.b16 %v386
  %v1643 = vunpack.c.l.b16 %v387
  %v1644 = vunpack.c.h.b16 %v387
  %v1645 = vunpack.c.l.b16 %v388
  %v1646 = vunpack.c.h.b16 %v388
  %v1647 = vunpack.c.l.b16 %v389
  %v1648 = vunpack.c.h.b16 %v389
  %v1649 = vunpack.c.l.b16 %v390
  %v1650 = vunpack.c.h.b16 %v390
  %v1651 = vunpack.c.l.b16 %v391
  %v1652 = vunpack.c.h.b16 %v391
  %v1653 = vunpack.c.l.b16 %v392
  %v1654 = vunpack.c.h.b16 %v392
  %v1655 = vunpack.c.l.b16 %v393
  %v1656 = vunpack.c.h.b16 %v393
  %v1657 = vunpack.c.l.b16 %v394
  %v1658 = vunpack.c.h.b16 %v394
  %v1659 = vunpack.c.l.b16 %v395
  %v1660 = vunpack.c.h.b16 %v395
  %v1661 = vunpack.c.l.b16 %v396
  %v1662 = vunpack.c.h.b16 %v396
  %v1663 = vunpack.c.l.b16 %v397
  %v1664 = vunpack.c.h.b16 %v397
  %v1665 = vunpack.c.l.b16 %v398
  %v1666 = vunpack.c.h.b16 %v398
  %v1667 = vunpack.c.l.b16 %v399
  %v1668 = vunpack.c.h.b16 %v399
  %v1669 = vunpack.c.l.b16 %v400
  %v1670 = vunpack.c.h.b16 %v400
  %v1671 = vunpack.c.l.b16 %v401
  %v1672 = vunpack.c.h.b16 %v401
  %v1673 = vunpack.c.l.b16 %v402
  %v1674 = vunpack.c.h.b16 %v402
  %v1675 = vunpack.c.l.b16 %v403
  %v1676 = vunpack.c.h.b16 %v403
  %v1677 = vunpack.c.l.b16 %v404
  %v1678 = vunpack.c.h.b16 %v404
  %v1679 = vunpack.c.l.b16 %v405
  %v1680 = vunpack.c.h.b16 %v405
  %v1681 = vunpack.c.l.b16 %v406
  %v1682 = vunpack.c.h.b16 %v406
  %v1683 = vunpack.c.l.b16 %v407
  %v1684 = vunpack.c.h.b16 %v407
  %v1685 = vunpack.c.l.b16 %v408
  %v1686 = vunpack.c.h.b16 %v408
  %v1687 = vunpack.c.l.b16 %v409
  %v1688 = vunpack.c.h.b16 %v409
  %v1689 = vunpack.c.l.b16 %v410
  %v1690 = vunpack.c.h.b16 %v410
  %v1691 = vunpack.c.l.b16 %v411
  %v1692 = vunpack.c.h.b16 %v411
  %v1693 = vunpack.c.l.b16 %v412
  %v1694 = vunpack.c.h.b16 %v412
  %v1695 = vunpack.c.l.b16 %v413
  %v1696 = vunpack.c.h.b16 %v413
  %v1697 = vunpack.c.l.b16 %v414
  %v1698 = vunpack.c.h.b16 %v414
  %v1699 = vunpack.c.l.b16 %v415
  %v1700 = vunpack.c.h.b16 %v415
  %v1701 = vunpack.c.l.b16 %v416
  %v1702 = vunpack.c.h.b16 %v416
  %v1703 = vunpack.c.l.b16 %v417
  %v1704 = vunpack.c.h.b16 %v417
  %v1705 = vunpack.c.l.b16 %v418
  %v1706 = vunpack.c.h.b16 %v418
  %v1707 = vunpack.c.l.b16 %v419
  %v1708 = vunpack.c.h.b16 %v419
  %v1709 = vunpack.c.l.b16 %v420
  %v1710 = vunpack.c.h.b16 %v420
  %v1711 = vunpack.c.l.b16 %v421
  %v1712 = vunpack.c.h.b16 %v421
  %v1713 = vunpack.c.l.b16 %v422
  %v1714 = vunpack.c.h.b16 %v422
  %v1715 = vunpack.c.l.b16 %v423
  %v1716 = vunpack.c.h.b16 %v423
  %v1717 = vunpack.c.l.b16 %v424
  %v1718 = vunpack.c.h.b16 %v424
  %v1719 = vunpack.c.l.b16 %v425
  %v1720 = vunpack.c.h.b16 %v425
  %v1721 = vunpack.c.l.b16 %v426
  %v1722 = vunpack.c.h.b16 %v426
  %v1723 = vunpack.c.l.b16 %v427
  %v1724 = vunpack.c.h.b16 %v427
  %v1725 = vunpack.c.l.b16 %v428
  %v1726 = vunpack.c.h.b16 %v428
  %v1727 = vunpack.c.l.b16 %v429
  %v1728 = vunpack.c.h.b16 %v429
  %v1729 = vunpack.c.l.b16 %v430
  %v1730 = vunpack.c.h.b16 %v430
  %v1731 = vunpack.c.l.b16 %v431
  %v1732 = vunpack.c.h.b16 %v431
  %v1733 = vunpack.c.l.b16 %v432
  %v1734 = vunpack.c.h.b16 %v432
  %v1735 = vunpack.c.l.b16 %v433
  %v1736 = vunpack.c.h.b16 %v433
  %v1737 = vunpack.c.l.b16 %v434
  %v1738 = vunpack.c.h.b16 %v434
  %v1739 = vunpack.c.l.b16 %v435
  %v1740 = vunpack.c.h.b16 %v435
  %v1741 = vunpack.c.l.b16 %v436
  %v1742 = vunpack.c.h.b16 %v436
  %v1743 = vunpack.c.l.b16 %v437
  %v1744 = vunpack.c.h.b16 %v437
  %v1745 = vunpack.c.l.b16 %v438
  %v1746 = vunpack.c.h.b16 %v438
  %v1747 = vunpack.c.l.b16 %v439
  %v1748 = vunpack.c.h.b16 %v439
  %v1749 = vunpack.c.l.b16 %v440
  %v1750 = vunpack.c.h.b16 %v440
  %v1751 = vunpack.c.l.b16 %v441
  %v1752 = vunpack.c.h.b16 %v441
  %v1753 = vunpack.c.l.b16 %v442
  %v1754 = vunpack.c.h.b16 %v442
  %v1755 = vunpack.c.l.b16 %v443
  %v1756 = vunpack.c.h.b16 %v443
  %v1757 = vunpack.c.l.b16 %v444
  %v1758 = vunpack.c.h.b16 %v444
  %v1759 = vunpack.c.l.b16 %v445
  %v1760 = vunpack.c.h.b16 %v445
  %v1761 = vunpack.c.l.b16 %v446
  %v1762 = vunpack.c.h.b16 %v446
  %v1763 = vpack.c.b16 %v935, %v931
  %v1764 = vpack.c.b16 %v936, %v932
  %v1765 = vpack.c.b16 %v937, %v933
  %v1766 = vpack.c.b16 %v938, %v934
  %v1767 = vpack.c.b16 %v943, %v939
  %v1768 = vpack.c.b16 %v944, %v940
  %v1769 = vpack.c.b16 %v945, %v941
  %v1770 = vpack.c.b16 %v946, %v942
  %v1771 = vpack.c.b16 %v951, %v947
  %v1772 = vpack.c.b16 %v952, %v948
  %v1773 = vpack.c.b16 %v953, %v949
  %v1774 = vpack.c.b16 %v954, %v950
  %v1775 = vpack.c.b16 %v959, %v955
  %v1776 = vpack.c.b16 %v960, %v956
  %v1777 = vpack.c.b16 %v961, %v957
  %v1778 = vpack.c.b16 %v962, %v958
  %v1779 = vpack.c.b16 %v967, %v963
  %v1780 = vpack.c.b16 %v968, %v964
  %v1781 = vpack.c.b16 %v969, %v965
  %v1782 = vpack.c.b16 %v970, %v966
  %v1783 = vpack.c.b16 %v975, %v971
  %v1784 = vpack.c.b16 %v976, %v972
  %v1785 = vpack.c.b16 %v977, %v973
  %v1786 = vpack.c.b16 %v978, %v974
  %v1787 = vpack.c.b16 %v983, %v979
  %v1788 = vpack.c.b16 %v984, %v980
  %v1789 = vpack.c.b16 %v985, %v981
  %v1790 = vpack.c.b16 %v986, %v982
  %v1791 = vpack.c.b16 %v991, %v987
  %v1792 = vpack.c.b16 %v992, %v988
  %v1793 = vpack.c.b16 %v993, %v989
  %v1794 = vpack.c.b16 %v994, %v990
  %v1795 = vpack.c.b16 %v999, %v995
  %v1796 = vpack.c.b16 %v1000, %v996
  %v1797 = vpack.c.b16 %v1001, %v997
  %v1798 = vpack.c.b16 %v1002, %v998
  %v1799 = vpack.c.b16 %v1007, %v1003
  %v1800 = vpack.c.b16 %v1008, %v1004
  %v1801 = vpack.c.b16 %v1009, %v1005
  %v1802 = vpack.c.b16 %v1010, %v1006
  %v1803 = vpack.c.b16 %v1015, %v1011
  %v1804 = vpack.c.b16 %v1016, %v1012
  %v1805 = vpack.c.b16 %v1017, %v1013
  %v1806 = vpack.c.b16 %v1018, %v1014
  %v1807 = vpack.c.b16 %v1023, %v1019
  %v1808 = vpack.c.b16 %v1024, %v1020
  %v1809 = vpack.c.b16 %v1025, %v1021
  %v1810 = vpack.c.b16 %v1026, %v1022
  %v1811 = vpack.c.b16 %v1031, %v1027
  %v1812 = vpack.c.b16 %v1032, %v1028
  %v1813 = vpack.c.b16 %v1033, %v1029
  %v1814 = vpack.c.b16 %v1034, %v1030
  %v1815 = vpack.c.b16 %v1039, %v1035
  %v1816 = vpack.c.b16 %v1040, %v1036
  %v1817 = vpack.c.b16 %v1041, %v1037
  %v1818 = vpack.c.b16 %v1042, %v1038
  %v1819 = vpack.c.b16 %v1047, %v1043
  %v1820 = vpack.c.b16 %v1048, %v1044
  %v1821 = vpack.c.b16 %v1049, %v1045
  %v1822 = vpack.c.b16 %v1050, %v1046
  %v1823 = vpack.c.b16 %v1055, %v1051
  %v1824 = vpack.c.b16 %v1056, %v1052
  %v1825 = vpack.c.b16 %v1057, %v1053
  %v1826 = vpack.c.b16 %v1058, %v1054
  %v1827 = vpack.c.b16 %v1063, %v1059
  %v1828 = vpack.c.b16 %v1064, %v1060
  %v1829 = vpack.c.b16 %v1065, %v1061
  %v1830 = vpack.c.b16 %v1066, %v1062
  %v1831 = vpack.c.b16 %v1071, %v1067
  %v1832 = vpack.c.b16 %v1072, %v1068
  %v1833 = vpack.c.b16 %v1073, %v1069
  %v1834 = vpack.c.b16 %v1074, %v1070
  %v1835 = vpack.c.b16 %v1079, %v1075
  %v1836 = vpack.c.b16 %v1080, %v1076
  %v1837 = vpack.c.b16 %v1081, %v1077
  %v1838 = vpack.c.b16 %v1082, %v1078
  %v1839 = vpack.c.b16 %v1087, %v1083
  %v1840 = vpack.c.b16 %v1088, %v1084
  %v1841 = vpack.c.b16 %v1089, %v1085
  %v1842 = vpack.c.b16 %v1090, %v1086
  %v1843 = vpack.c.b16 %v1095, %v1091
  %v1844 = vpack.c.b16 %v1096, %v1092
  %v1845 = vpack.c.b16 %v1097, %v1093
  %v1846 = vpack.c.b16 %v1098, %v1094
  %v1847 = vpack.c.b16 %v1103, %v1099
  %v1848 = vpack.c.b16 %v1104, %v1100
  %v1849 = vpack.c.b16 %v1105, %v1101
  %v1850 = vpack.c.b16 %v1106, %v1102
  %v1851 = vpack.c.b16 %v1111, %v1107
  %v1852 = vpack.c.b16 %v1112, %v1108
  %v1853 = vpack.c.b16 %v1113, %v1109
  %v1854 = vpack.c.b16 %v1114, %v1110
  %v1855 = vpack.c.b16 %v1119, %v1115
  %v1856 = vpack.c.b16 %v1120, %v1116
  %v1857 = vpack.c.b16 %v1121, %v1117
  %v1858 = vpack.c.b16 %v1122, %v1118
  %v1859 = vpack.c.b16 %v1127, %v1123
  %v1860 = vpack.c.b16 %v1128, %v1124
  %v1861 = vpack.c.b16 %v1129, %v1125
  %v1862 = vpack.c.b16 %v1130, %v1126
  %v1863 = vpack.c.b16 %v1135, %v1131
  %v1864 = vpack.c.b16 %v1136, %v1132
  %v1865 = vpack.c.b16 %v1137, %v1133
  %v1866 = vpack.c.b16 %v1138, %v1134
  %v1867 = vpack.c.b16 %v1143, %v1139
  %v1868 = vpack.c.b16 %v1144, %v1140
  %v1869 = vpack.c.b16 %v1145, %v1141
  %v1870 = vpack.c.b16 %v1146, %v1142
  %v1871 = vpack.c.b16 %v1151, %v1147
  %v1872 = vpack.c.b16 %v1152, %v1148
  %v1873 = vpack.c.b16 %v1153, %v1149
  %v1874 = vpack.c.b16 %v1154, %v1150
  %v1875 = vpack.c.b16 %v1159, %v1155
  %v1876 = vpack.c.b16 %v1160, %v1156
  %v1877 = vpack.c.b16 %v1161, %v1157
  %v1878 = vpack.c.b16 %v1162, %v1158
  %v1879 = vpack.c.b16 %v1167, %v1163
  %v1880 = vpack.c.b16 %v1168, %v1164
  %v1881 = vpack.c.b16 %v1169, %v1165
  %v1882 = vpack.c.b16 %v1170, %v1166
  %v1883 = vpack.c.b16 %v1175, %v1171
  %v1884 = vpack.c.b16 %v1176, %v1172
  %v1885 = vpack.c.b16 %v1177, %v1173
  %v1886 = vpack.c.b16 %v1178, %v1174
  %v1887 = vpack.c.b16 %v1183, %v1179
  %v1888 = vpack.c.b16 %v1184, %v1180
  %v1889 = vpack.c.b16 %v1185, %v1181
  %v1890 = vpack.c.b16 %v1186, %v1182
  %v1891 = vpack.c.b16 %v1191, %v1187
  %v1892 = vpack.c.b16 %v1192, %v1188
  %v1893 = vpack.c.b16 %v1193, %v1189
  %v1894 = vpack.c.b16 %v1194, %v1190
  %v1895 = vpack.c.b16 %v1199, %v1195
  %v1896 = vpack.c.b16 %v1200, %v1196
  %v1897 = vpack.c.b16 %v1201, %v1197
  %v1898 = vpack.c.b16 %v1202, %v1198
  %v1899 = vpack.c.b16 %v1207, %v1203
  %v1900 = vpack.c.b16 %v1208, %v1204
  %v1901 = vpack.c.b16 %v1209, %v1205
  %v1902 = vpack.c.b16 %v1210, %v1206
  %v1903 = vpack.c.b16 %v1215, %v1211
  %v1904 = vpack.c.b16 %v1216, %v1212
  %v1905 = vpack.c.b16 %v1217, %v1213
  %v1906 = vpack.c.b16 %v1218, %v1214
  %v1907 = vpack.c.b16 %v1223, %v1219
  %v1908 = vpack.c.b16 %v1224, %v1220
  %v1909 = vpack.c.b16 %v1225, %v1221
  %v1910 = vpack.c.b16 %v1226, %v1222
  %v1911 = vpack.c.b16 %v1231, %v1227
  %v1912 = vpack.c.b16 %v1232, %v1228
  %v1913 = vpack.c.b16 %v1233, %v1229
  %v1914 = vpack.c.b16 %v1234, %v1230
  %v1915 = vpack.c.b16 %v1239, %v1235
  %v1916 = vpack.c.b16 %v1240, %v1236
  %v1917 = vpack.c.b16 %v1241, %v1237
  %v1918 = vpack.c.b16 %v1242, %v1238
  %v1919 = vpack.c.b16 %v1247, %v1243
  %v1920 = vpack.c.b16 %v1248, %v1244
  %v1921 = vpack.c.b16 %v1249, %v1245
  %v1922 = vpack.c.b16 %v1250, %v1246
  %v1923 = vpack.c.b16 %v1255, %v1251
  %v1924 = vpack.c.b16 %v1256, %v1252
  %v1925 = vpack.c.b16 %v1257, %v1253
  %v1926 = vpack.c.b16 %v1258, %v1254
  %v1927 = vpack.c.b16 %v1263, %v1259
  %v1928 = vpack.c.b16 %v1264, %v1260
  %v1929 = vpack.c.b16 %v1265, %v1261
  %v1930 = vpack.c.b16 %v1266, %v1262
  %v1931 = vpack.c.b16 %v1271, %v1267
  %v1932 = vpack.c.b16 %v1272, %v1268
  %v1933 = vpack.c.b16 %v1273, %v1269
  %v1934 = vpack.c.b16 %v1274, %v1270
  %v1935 = vpack.c.b16 %v1279, %v1275
  %v1936 = vpack.c.b16 %v1280, %v1276
  %v1937 = vpack.c.b16 %v1281, %v1277
  %v1938 = vpack.c.b16 %v1282, %v1278
  %v1939 = vpack.c.b16 %v1287, %v1283
  %v1940 = vpack.c.b16 %v1288, %v1284
  %v1941 = vpack.c.b16 %v1289, %v1285
  %v1942 = vpack.c.b16 %v1290, %v1286
  %v1943 = vpack.c.b16 %v1295, %v1291
  %v1944 = vpack.c.b16 %v1296, %v1292
  %v1945 = vpack.c.b16 %v1297, %v1293
  %v1946 = vpack.c.b16 %v1298, %v1294
  %v1947 = vpack.c.b16 %v1303, %v1299
  %v1948 = vpack.c.b16 %v1304, %v1300
  %v1949 = vpack.c.b16 %v1305, %v1301
  %v1950 = vpack.c.b16 %v1306, %v1302
  %v1951 = vpack.c.b16 %v1311, %v1307
  %v1952 = vpack.c.b16 %v1312, %v1308
  %v1953 = vpack.c.b16 %v1313, %v1309
  %v1954 = vpack.c.b16 %v1314, %v1310
  %v1955 = vpack.c.b16 %v1319, %v1315
  %v1956 = vpack.c.b16 %v1320, %v1316
  %v1957 = vpack.c.b16 %v1321, %v1317
  %v1958 = vpack.c.b16 %v1322, %v1318
  %v1959 = vpack.c.b16 %v1327, %v1323
  %v1960 = vpack.c.b16 %v1328, %v1324
  %v1961 = vpack.c.b16 %v1329, %v1325
  %v1962 = vpack.c.b16 %v1330, %v1326
  %v1963 = vpack.c.b16 %v1335, %v1331
  %v1964 = vpack.c.b16 %v1336, %v1332
  %v1965 = vpack.c.b16 %v1337, %v1333
  %v1966 = vpack.c.b16 %v1338, %v1334
  %v1967 = vpack.c.b16 %v1343, %v1339
  %v1968 = vpack.c.b16 %v1344, %v1340
  %v1969 = vpack.c.b16 %v1345, %v1341
  %v1970 = vpack.c.b16 %v1346, %v1342
  %v1971 = vpack.c.b16 %v1351, %v1347
  %v1972 = vpack.c.b16 %v1352, %v1348
  %v1973 = vpack.c.b16 %v1353, %v1349
  %v1974 = vpack.c.b16 %v1354, %v1350
  %v1975 = vpack.c.b16 %v1359, %v1355
  %v1976 = vpack.c.b16 %v1360, %v1356
  %v1977 = vpack.c.b16 %v1361, %v1357
  %v1978 = vpack.c.b16 %v1362, %v1358
  %v1979 = vpack.c.b16 %v1367, %v1363
  %v1980 = vpack.c.b16 %v1368, %v1364
  %v1981 = vpack.c.b16 %v1369, %v1365
  %v1982 = vpack.c.b16 %v1370, %v1366
  %v1983 = vpack.c.b16 %v1375, %v1371
  %v1984 = vpack.c.b16 %v1376, %v1372
  %v1985 = vpack.c.b16 %v1377, %v1373
  %v1986 = vpack.c.b16 %v1378, %v1374
  %v1987 = vpack.c.b16 %v1383, %v1379
  %v1988 = vpack.c.b16 %v1384, %v1380
  %v1989 = vpack.c.b16 %v1385, %v1381
  %v1990 = vpack.c.b16 %v1386, %v1382
  %v1991 = vpack.c.b16 %v1391, %v1387
  %v1992 = vpack.c.b16 %v1392, %v1388
  %v1993 = vpack.c.b16 %v1393, %v1389
  %v1994 = vpack.c.b16 %v1394, %v1390
  %v1995 = vpack.c.b16 %v1399, %v1395
  %v1996 = vpack.c.b16 %v1400, %v1396
  %v1997 = vpack.c.b16 %v1401, %v1397
  %v1998 = vpack.c.b16 %v1402, %v1398
  %v1999 = vpack.c.b16 %v1407, %v1403
  %v2000 = vpack.c.b16 %v1408, %v1404
  %v2001 = vpack.c.b16 %v1409, %v1405
  %v2002 = vpack.c.b16 %v1410, %v1406
  %v2003 = vpack.c.b16 %v1415, %v1411
  %v2004 = vpack.c.b16 %v1416, %v1412
  %v2005 = vpack.c.b16 %v1417, %v1413
  %v2006 = vpack.c.b16 %v1418, %v1414
  %v2007 = vpack.c.b16 %v1423, %v1419
  %v2008 = vpack.c.b16 %v1424, %v1420
  %v2009 = vpack.c.b16 %v1425, %v1421
  %v2010 = vpack.c.b16 %v1426, %v1422
  %v2011 = vpack.c.b16 %v1431, %v1427
  %v2012 = vpack.c.b16 %v1432, %v1428
  %v2013 = vpack.c.b16 %v1433, %v1429
  %v2014 = vpack.c.b16 %v1434, %v1430
  %v2015 = vpack.c.b16 %v1439, %v1435
  %v2016 = vpack.c.b16 %v1440, %v1436
  %v2017 = vpack.c.b16 %v1441, %v1437
  %v2018 = vpack.c.b16 %v1442, %v1438
  %v2019 = vpack.c.b16 %v1447, %v1443
  %v2020 = vpack.c.b16 %v1448, %v1444
  %v2021 = vpack.c.b16 %v1449, %v1445
  %v2022 = vpack.c.b16 %v1450, %v1446
  %v2023 = vpack.c.b16 %v1455, %v1451
  %v2024 = vpack.c.b16 %v1456, %v1452
  %v2025 = vpack.c.b16 %v1457, %v1453
  %v2026 = vpack.c.b16 %v1458, %v1454
  %v2027 = vpack.c.b16 %v1463, %v1459
  %v2028 = vpack.c.b16 %v1464, %v1460
  %v2029 = vpack.c.b16 %v1465, %v1461
  %v2030 = vpack.c.b16 %v1466, %v1462
  %v2031 = vpack.c.b16 %v1471, %v1467
  %v2032 = vpack.c.b16 %v1472, %v1468
  %v2033 = vpack.c.b16 %v1473, %v1469
  %v2034 = vpack.c.b16 %v1474, %v1470
  %v2035 = vpack.c.b16 %v1479, %v1475
  %v2036 = vpack.c.b16 %v1480, %v1476
  %v2037 = vpack.c.b16 %v1481, %v1477
  %v2038 = vpack.c.b16 %v1482, %v1478
  %v2039 = vpack.c.b16 %v1487, %v1483
  %v2040 = vpack.c.b16 %v1488, %v1484
  %v2041 = vpack.c.b16 %v1489, %v1485
  %v2042 = vpack.c.b16 %v1490, %v1486
  %v2043 = vpack.c.b16 %v1495, %v1491
  %v2044 = vpack.c.b16 %v1496, %v1492
  %v2045 = vpack.c.b16 %v1497, %v1493
  %v2046 = vpack.c.b16 %v1498, %v1494
  %v2047 = vpack.c.b16 %v1503, %v1499
  %v2048 = vpack.c.b16 %v1504, %v1500
  %v2049 = vpack.c.b16 %v1505, %v1501
  %v2050 = vpack.c.b16 %v1506, %v1502
  %v2051 = vpack.c.b16 %v1511, %v1507
  %v2052 = vpack.c.b16 %v1512, %v1508
  %v2053 = vpack.c.b16 %v1513, %v1509
  %v2054 = vpack.c.b16 %v1514, %v1510
  %v2055 = vpack.c.b16 %v1519, %v1515
  %v2056 = vpack.c.b16 %v1520, %v1516
  %v2057 = vpack.c.b16 %v1521, %v1517
  %v2058 = vpack.c.b16 %v1522, %v1518
  %v2059 = vpack.c.b16 %v1527, %v1523
  %v2060 = vpack.c.b16 %v1528, %v1524
  %v2061 = vpack.c.b16 %v1529, %v1525
  %v2062 = vpack.c.b16 %v1530, %v1526
  %v2063 = vpack.c.b16 %v1535, %v1531
  %v2064 = vpack.c.b16 %v1536, %v1532
  %v2065 = vpack.c.b16 %v1537, %v1533
  %v2066 = vpack.c.b16 %v1538, %v1534
  %v2067 = vpack.c.b16 %v1543, %v1539
  %v2068 = vpack.c.b16 %v1544, %v1540
  %v2069 = vpack.c.b16 %v1545, %v1541
  %v2070 = vpack.c.b16 %v1546, %v1542
  %v2071 = vpack.c.b16 %v1551, %v1547
  %v2072 = vpack.c.b16 %v1552, %v1548
  %v2073 = vpack.c.b16 %v1553, %v1549
  %v2074 = vpack.c.b16 %v1554, %v1550
  %v2075 = vpack.c.b16 %v1559, %v1555
  %v2076 = vpack.c.b16 %v1560, %v1556
  %v2077 = vpack.c.b16 %v1561, %v1557
  %v2078 = vpack.c.b16 %v1562, %v1558
  %v2079 = vpack.c.b16 %v1567, %v1563
  %v2080 = vpack.c.b16 %v1568, %v1564
  %v2081 = vpack.c.b16 %v1569, %v1565
  %v2082 = vpack.c.b16 %v1570, %v1566
  %v2083 = vpack.c.b16 %v1575, %v1571
  %v2084 = vpack.c.b16 %v1576, %v1572
  %v2085 = vpack.c.b16 %v1577, %v1573
  %v2086 = vpack.c.b16 %v1578, %v1574
  %v2087 = vpack.c.b16 %v1583, %v1579
  %v2088 = vpack.c.b16 %v1584, %v1580
  %v2089 = vpack.c.b16 %v1585, %v1581
  %v2090 = vpack.c.b16 %v1586, %v1582
  %v2091 = vpack.c.b16 %v1591, %v1587
  %v2092 = vpack.c.b16 %v1592, %v1588
  %v2093 = vpack.c.b16 %v1593, %v1589
  %v2094 = vpack.c.b16 %v1594, %v1590
  %v2095 = vpack.c.b16 %v1599, %v1595
  %v2096 = vpack.c.b16 %v1600, %v1596
  %v2097 = vpack.c.b16 %v1601, %v1597
  %v2098 = vpack.c.b16 %v1602, %v1598
  %v2099 = vpack.c.b16 %v1607, %v1603
  %v2100 = vpack.c.b16 %v1608, %v1604
  %v2101 = vpack.c.b16 %v1609, %v1605
  %v2102 = vpack.c.b16 %v1610, %v1606
  %v2103 = vpack.c.b16 %v1615, %v1611
  %v2104 = vpack.c.b16 %v1616, %v1612
  %v2105 = vpack.c.b16 %v1617, %v1613
  %v2106 = vpack.c.b16 %v1618, %v1614
  %v2107 = vpack.c.b16 %v1623, %v1619
  %v2108 = vpack.c.b16 %v1624, %v1620
  %v2109 = vpack.c.b16 %v1625, %v1621
  %v2110 = vpack.c.b16 %v1626, %v1622
  %v2111 = vpack.c.b16 %v1631, %v1627
  %v2112 = vpack.c.b16 %v1632, %v1628
  %v2113 = vpack.c.b16 %v1633, %v1629
  %v2114 = vpack.c.b16 %v1634, %v1630
  %v2115 = vpack.c.b16 %v1639, %v1635
  %v2116 = vpack.c.b16 %v1640, %v1636
  %v2117 = vpack.c.b16 %v1641, %v1637
  %v2118 = vpack.c.b16 %v1642, %v1638
  %v2119 = vpack.c.b16 %v1647, %v1643
  %v2120 = vpack.c.b16 %v1648, %v1644
  %v2121 = vpack.c.b16 %v1649, %v1645
  %v2122 = vpack.c.b16 %v1650, %v1646
  %v2123 = vpack.c.b16 %v1655, %v1651
  %v2124 = vpack.c.b16 %v1656, %v1652
  %v2125 = vpack.c.b16 %v1657, %v1653
  %v2126 = vpack.c.b16 %v1658, %v1654
  %v2127 = vpack.c.b16 %v1663, %v1659
  %v2128 = vpack.c.b16 %v1664, %v1660
  %v2129 = vpack.c.b16 %v1665, %v1661
  %v2130 = vpack.c.b16 %v1666, %v1662
  %v2131 = vpack.c.b16 %v1671, %v1667
  %v2132 = vpack.c.b16 %v1672, %v1668
  %v2133 = vpack.c.b16 %v1673, %v1669
  %v2134 = vpack.c.b16 %v1674, %v1670
  %v2135 = vpack.c.b16 %v1679, %v1675
  %v2136 = vpack.c.b16 %v1680, %v1676
  %v2137 = vpack.c.b16 %v1681, %v1677
  %v2138 = vpack.c.b16 %v1682, %v1678
  %v2139 = vpack.c.b16 %v1687, %v1683
  %v2140 = vpack.c.b16 %v1688, %v1684
  %v2141 = vpack.c.b16 %v1689, %v1685
  %v2142 = vpack.c.b16 %v1690, %v1686
  %v2143 = vpack.c.b16 %v1695, %v1691
  %v2144 = vpack.c.b16 %v1696, %v1692
  %v2145 = vpack.c.b16 %v1697, %v1693
  %v2146 = vpack.c.b16 %v1698, %v1694
  %v2147 = vpack.c.b16 %v1703, %v1699
  %v2148 = vpack.c.b16 %v1704, %v1700
  %v2149 = vpack.c.b16 %v1705, %v1701
  %v2150 = vpack.c.b16 %v1706, %v1702
  %v2151 = vpack.c.b16 %v1711, %v1707
  %v2152 = vpack.c.b16 %v1712, %v1708
  %v2153 = vpack.c.b16 %v1713, %v1709
  %v2154 = vpack.c.b16 %v1714, %v1710
  %v2155 = vpack.c.b16 %v1719, %v1715
  %v2156 = vpack.c.b16 %v1720, %v1716
  %v2157 = vpack.c.b16 %v1721, %v1717
  %v2158 = vpack.c.b16 %v1722, %v1718
  %v2159 = vpack.c.b16 %v1727, %v1723
  %v2160 = vpack.c.b16 %v1728, %v1724
  %v2161 = vpack.c.b16 %v1729, %v1725
  %v2162 = vpack.c.b16 %v1730, %v1726
  %v2163 = vpack.c.b16 %v1735, %v1731
  %v2164 = vpack.c.b16 %v1736, %v1732
  %v2165 = vpack.c.b16 %v1737, %v1733
  %v2166 = vpack.c.b16 %v1738, %v1734
  %v2167 = vpack.c.b16 %v1743, %v1739
  %v2168 = vpack.c.b16 %v1744, %v1740
  %v2169 = vpack.c.b16 %v1745, %v1741
  %v2170 = vpack.c.b16 %v1746, %v1742
  %v2171 = vpack.c.b16 %v1751, %v1747
  %v2172 = vpack.c.b16 %v1752, %v1748
  %v2173 = vpack.c.b16 %v1753, %v1749
  %v2174 = vpack.c.b16 %v1754, %v1750
  %v2175 = vpack.c.b16 %v1759, %v1755
  %v2176 = vpack.c.b16 %v1760, %v1756
  %v2177 = vpack.c.b16 %v1761, %v1757
  %v2178 = vpack.c.b16 %v1762, %v1758
  %2595 = vmatprep.subr.bf16.mxu0 %v1764
  %2596 = vmatpush1.bf16.msra.mxu0 %v1763
  %2597 = vmatprep.subr.bf16.mxu0 %v1768
  %2598 = vmatpush1.bf16.msra.mxu0 %v1767
  %2599 = vmatprep.subr.bf16.mxu0 %v1772
  %2600 = vmatpush1.bf16.msra.mxu0 %v1771
  %2601 = vmatprep.subr.bf16.mxu0 %v1776
  %2602 = vmatpush1.bf16.msra.mxu0 %v1775
  %2603 = vmatprep.subr.bf16.mxu0 %v1780
  %2604 = vmatpush1.bf16.msra.mxu0 %v1779
  %2605 = vmatprep.subr.bf16.mxu0 %v1784
  %2606 = vmatpush1.bf16.msra.mxu0 %v1783
  %2607 = vmatprep.subr.bf16.mxu0 %v1788
  %2608 = vmatpush1.bf16.msra.mxu0 %v1787
  %2609 = vmatprep.subr.bf16.mxu0 %v1792
  %2610 = vmatpush1.bf16.msra.mxu0 %v1791
  %2611 = vmatprep.subr.bf16.mxu0 %v1796
  %2612 = vmatpush1.bf16.msra.mxu0 %v1795
  %2613 = vmatprep.subr.bf16.mxu0 %v1800
  %2614 = vmatpush1.bf16.msra.mxu0 %v1799
  %2615 = vmatprep.subr.bf16.mxu0 %v1804
  %2616 = vmatpush1.bf16.msra.mxu0 %v1803
  %2617 = vmatprep.subr.bf16.mxu0 %v1808
  %2618 = vmatpush1.bf16.msra.mxu0 %v1807
  %2619 = vmatprep.subr.bf16.mxu0 %v1812
  %2620 = vmatpush1.bf16.msra.mxu0 %v1811
  %2621 = vmatprep.subr.bf16.mxu0 %v1816
  %2622 = vmatpush1.bf16.msra.mxu0 %v1815
  %2623 = vmatprep.subr.bf16.mxu0 %v1820
  %2624 = vmatpush1.bf16.msra.mxu0 %v1819
  %2625 = vmatprep.subr.bf16.mxu0 %v1824
  %2626 = vmatpush1.bf16.msra.mxu0 %v1823
  %2627 = vmatprep.mubr.bf16.mxu0 %v490
  %2628 = vmatmul.mubr.bf16.gmra.mrb[0].mxu0 %v489
  %v2629 = vpop.f32.mrb[0].mxu0
  %v2630 = vadd.f32 %v452, %v2629
  %v2631 = vpop.f32.mrb[0].mxu0
  %v2632 = vadd.f32 %v456, %v2631
  %v2633 = vpop.f32.mrb[0].mxu0
  %v2634 = vpop.f32.mrb[0].mxu0
  %2635 = vdwg.mxu0
  %2636 = vmatprep.subr.bf16.mxu0 %v1828
  %2637 = vmatpush1.bf16.msra.mxu0 %v1827
  %2638 = vmatprep.subr.bf16.mxu0 %v1832
  %2639 = vmatpush1.bf16.msra.mxu0 %v1831
  %2640 = vmatprep.subr.bf16.mxu0 %v1836
  %2641 = vmatpush1.bf16.msra.mxu0 %v1835
  %2642 = vmatprep.subr.bf16.mxu0 %v1840
  %2643 = vmatpush1.bf16.msra.mxu0 %v1839
  %2644 = vmatprep.subr.bf16.mxu0 %v1844
  %2645 = vmatpush1.bf16.msra.mxu0 %v1843
  %2646 = vmatprep.subr.bf16.mxu0 %v1848
  %2647 = vmatpush1.bf16.msra.mxu0 %v1847
  %2648 = vmatprep.subr.bf16.mxu0 %v1852
  %2649 = vmatpush1.bf16.msra.mxu0 %v1851
  %2650 = vmatprep.subr.bf16.mxu0 %v1856
  %2651 = vmatpush1.bf16.msra.mxu0 %v1855
  %2652 = vmatprep.subr.bf16.mxu0 %v1860
  %2653 = vmatpush1.bf16.msra.mxu0 %v1859
  %2654 = vmatprep.subr.bf16.mxu0 %v1864
  %2655 = vmatpush1.bf16.msra.mxu0 %v1863
  %2656 = vmatprep.subr.bf16.mxu0 %v1868
  %2657 = vmatpush1.bf16.msra.mxu0 %v1867
  %2658 = vmatprep.subr.bf16.mxu0 %v1872
  %2659 = vmatpush1.bf16.msra.mxu0 %v1871
  %2660 = vmatprep.subr.bf16.mxu0 %v1876
  %2661 = vmatpush1.bf16.msra.mxu0 %v1875
  %2662 = vmatprep.subr.bf16.mxu0 %v1880
  %2663 = vmatpush1.bf16.msra.mxu0 %v1879
  %2664 = vmatprep.subr.bf16.mxu0 %v1884
  %2665 = vmatpush1.bf16.msra.mxu0 %v1883
  %2666 = vmatprep.subr.bf16.mxu0 %v1888
  %2667 = vmatpush1.bf16.msra.mxu0 %v1887
  %2668 = vmatprep.mubr.bf16.mxu0 %v492
  %2669 = vmatmul.mubr.bf16.gmra.mrb[0].mxu0 %v491
  %v2670 = vpop.f32.mrb[0].mxu0
  %v2671 = vadd.f32 %v2630, %v2670
  %v2672 = vpop.f32.mrb[0].mxu0
  %v2673 = vadd.f32 %v2632, %v2672
  %v2674 = vpop.f32.mrb[0].mxu0
  %v2675 = vpop.f32.mrb[0].mxu0
  %2676 = vdwg.mxu0
  %2677 = vmatprep.subr.bf16.mxu0 %v1892
  %2678 = vmatpush1.bf16.msra.mxu0 %v1891
  %2679 = vmatprep.subr.bf16.mxu0 %v1896
  %2680 = vmatpush1.bf16.msra.mxu0 %v1895
  %2681 = vmatprep.subr.bf16.mxu0 %v1900
  %2682 = vmatpush1.bf16.msra.mxu0 %v1899
  %2683 = vmatprep.subr.bf16.mxu0 %v1904
  %2684 = vmatpush1.bf16.msra.mxu0 %v1903
  %2685 = vmatprep.subr.bf16.mxu0 %v1908
  %2686 = vmatpush1.bf16.msra.mxu0 %v1907
  %2687 = vmatprep.subr.bf16.mxu0 %v1912
  %2688 = vmatpush1.bf16.msra.mxu0 %v1911
  %2689 = vmatprep.subr.bf16.mxu0 %v1916
  %2690 = vmatpush1.bf16.msra.mxu0 %v1915
  %2691 = vmatprep.subr.bf16.mxu0 %v1920
  %2692 = vmatpush1.bf16.msra.mxu0 %v1919
  %2693 = vmatprep.subr.bf16.mxu0 %v1924
  %2694 = vmatpush1.bf16.msra.mxu0 %v1923
  %2695 = vmatprep.subr.bf16.mxu0 %v1928
  %2696 = vmatpush1.bf16.msra.mxu0 %v1927
  %2697 = vmatprep.subr.bf16.mxu0 %v1932
  %2698 = vmatpush1.bf16.msra.mxu0 %v1931
  %2699 = vmatprep.subr.bf16.mxu0 %v1936
  %2700 = vmatpush1.bf16.msra.mxu0 %v1935
  %2701 = vmatprep.subr.bf16.mxu0 %v1940
  %2702 = vmatpush1.bf16.msra.mxu0 %v1939
  %2703 = vmatprep.subr.bf16.mxu0 %v1944
  %2704 = vmatpush1.bf16.msra.mxu0 %v1943
  %2705 = vmatprep.subr.bf16.mxu0 %v1948
  %2706 = vmatpush1.bf16.msra.mxu0 %v1947
  %2707 = vmatprep.subr.bf16.mxu0 %v1952
  %2708 = vmatpush1.bf16.msra.mxu0 %v1951
  %2709 = vmatprep.mubr.bf16.mxu0 %v494
  %2710 = vmatmul.mubr.bf16.gmra.mrb[0].mxu0 %v493
  %v2711 = vpop.f32.mrb[0].mxu0
  %v2712 = vadd.f32 %v2671, %v2711
  %v2713 = vpop.f32.mrb[0].mxu0
  %v2714 = vadd.f32 %v2673, %v2713
  %v2715 = vpop.f32.mrb[0].mxu0
  %v2716 = vpop.f32.mrb[0].mxu0
  %2717 = vdwg.mxu0
  %2718 = vmatprep.subr.bf16.mxu0 %v1956
  %2719 = vmatpush1.bf16.msra.mxu0 %v1955
  %2720 = vmatprep.subr.bf16.mxu0 %v1960
  %2721 = vmatpush1.bf16.msra.mxu0 %v1959
  %2722 = vmatprep.subr.bf16.mxu0 %v1964
  %2723 = vmatpush1.bf16.msra.mxu0 %v1963
  %2724 = vmatprep.subr.bf16.mxu0 %v1968
  %2725 = vmatpush1.bf16.msra.mxu0 %v1967
  %2726 = vmatprep.subr.bf16.mxu0 %v1972
  %2727 = vmatpush1.bf16.msra.mxu0 %v1971
  %2728 = vmatprep.subr.bf16.mxu0 %v1976
  %2729 = vmatpush1.bf16.msra.mxu0 %v1975
  %2730 = vmatprep.subr.bf16.mxu0 %v1980
  %2731 = vmatpush1.bf16.msra.mxu0 %v1979
  %2732 = vmatprep.subr.bf16.mxu0 %v1984
  %2733 = vmatpush1.bf16.msra.mxu0 %v1983
  %2734 = vmatprep.subr.bf16.mxu0 %v1988
  %2735 = vmatpush1.bf16.msra.mxu0 %v1987
  %2736 = vmatprep.subr.bf16.mxu0 %v1992
  %2737 = vmatpush1.bf16.msra.mxu0 %v1991
  %2738 = vmatprep.subr.bf16.mxu0 %v1996
  %2739 = vmatpush1.bf16.msra.mxu0 %v1995
  %2740 = vmatprep.subr.bf16.mxu0 %v2000
  %2741 = vmatpush1.bf16.msra.mxu0 %v1999
  %2742 = vmatprep.subr.bf16.mxu0 %v2004
  %2743 = vmatpush1.bf16.msra.mxu0 %v2003
  %2744 = vmatprep.subr.bf16.mxu0 %v2008
  %2745 = vmatpush1.bf16.msra.mxu0 %v2007
  %2746 = vmatprep.subr.bf16.mxu0 %v2012
  %2747 = vmatpush1.bf16.msra.mxu0 %v2011
  %2748 = vmatprep.subr.bf16.mxu0 %v2016
  %2749 = vmatpush1.bf16.msra.mxu0 %v2015
  %2750 = vmatprep.mubr.bf16.mxu0 %v496
  %2751 = vmatmul.mubr.bf16.gmra.mrb[0].mxu0 %v495
  %v2752 = vpop.f32.mrb[0].mxu0
  %v2753 = vadd.f32 %v2712, %v2752
  %v2754 = vpop.f32.mrb[0].mxu0
  %v2755 = vadd.f32 %v2714, %v2754
  %v2756 = vpop.f32.mrb[0].mxu0
  %v2757 = vpop.f32.mrb[0].mxu0
  %2758 = vdwg.mxu0
  %2759 = vmatprep.subr.bf16.mxu0 %v2020
  %2760 = vmatpush1.bf16.msra.mxu0 %v2019
  %2761 = vmatprep.subr.bf16.mxu0 %v2024
  %2762 = vmatpush1.bf16.msra.mxu0 %v2023
  %2763 = vmatprep.subr.bf16.mxu0 %v2028
  %2764 = vmatpush1.bf16.msra.mxu0 %v2027
  %2765 = vmatprep.subr.bf16.mxu0 %v2032
  %2766 = vmatpush1.bf16.msra.mxu0 %v2031
  %2767 = vmatprep.subr.bf16.mxu0 %v2036
  %2768 = vmatpush1.bf16.msra.mxu0 %v2035
  %2769 = vmatprep.subr.bf16.mxu0 %v2040
  %2770 = vmatpush1.bf16.msra.mxu0 %v2039
  %2771 = vmatprep.subr.bf16.mxu0 %v2044
  %2772 = vmatpush1.bf16.msra.mxu0 %v2043
  %2773 = vmatprep.subr.bf16.mxu0 %v2048
  %2774 = vmatpush1.bf16.msra.mxu0 %v2047
  %2775 = vmatprep.subr.bf16.mxu0 %v2052
  %2776 = vmatpush1.bf16.msra.mxu0 %v2051
  %2777 = vmatprep.subr.bf16.mxu0 %v2056
  %2778 = vmatpush1.bf16.msra.mxu0 %v2055
  %2779 = vmatprep.subr.bf16.mxu0 %v2060
  %2780 = vmatpush1.bf16.msra.mxu0 %v2059
  %2781 = vmatprep.subr.bf16.mxu0 %v2064
  %2782 = vmatpush1.bf16.msra.mxu0 %v2063
  %2783 = vmatprep.subr.bf16.mxu0 %v2068
  %2784 = vmatpush1.bf16.msra.mxu0 %v2067
  %2785 = vmatprep.subr.bf16.mxu0 %v2072
  %2786 = vmatpush1.bf16.msra.mxu0 %v2071
  %2787 = vmatprep.subr.bf16.mxu0 %v2076
  %2788 = vmatpush1.bf16.msra.mxu0 %v2075
  %2789 = vmatprep.subr.bf16.mxu0 %v2080
  %2790 = vmatpush1.bf16.msra.mxu0 %v2079
  %2791 = vmatprep.mubr.bf16.mxu0 %v498
  %2792 = vmatmul.mubr.bf16.gmra.mrb[0].mxu0 %v497
  %v2793 = vpop.f32.mrb[0].mxu0
  %v2794 = vadd.f32 %v2753, %v2793
  %v2795 = vpop.f32.mrb[0].mxu0
  %v2796 = vadd.f32 %v2755, %v2795
  %v2797 = vpop.f32.mrb[0].mxu0
  %v2798 = vpop.f32.mrb[0].mxu0
  %2799 = vdwg.mxu0
  %2800 = vmatprep.subr.bf16.mxu0 %v2084
  %2801 = vmatpush1.bf16.msra.mxu0 %v2083
  %2802 = vmatprep.subr.bf16.mxu0 %v2088
  %2803 = vmatpush1.bf16.msra.mxu0 %v2087
  %2804 = vmatprep.subr.bf16.mxu0 %v2092
  %2805 = vmatpush1.bf16.msra.mxu0 %v2091
  %2806 = vmatprep.subr.bf16.mxu0 %v2096
  %2807 = vmatpush1.bf16.msra.mxu0 %v2095
  %2808 = vmatprep.subr.bf16.mxu0 %v2100
  %2809 = vmatpush1.bf16.msra.mxu0 %v2099
  %2810 = vmatprep.subr.bf16.mxu0 %v2104
  %2811 = vmatpush1.bf16.msra.mxu0 %v2103
  %2812 = vmatprep.subr.bf16.mxu0 %v2108
  %2813 = vmatpush1.bf16.msra.mxu0 %v2107
  %2814 = vmatprep.subr.bf16.mxu0 %v2112
  %2815 = vmatpush1.bf16.msra.mxu0 %v2111
  %2816 = vmatprep.subr.bf16.mxu0 %v2116
  %2817 = vmatpush1.bf16.msra.mxu0 %v2115
  %2818 = vmatprep.subr.bf16.mxu0 %v2120
  %2819 = vmatpush1.bf16.msra.mxu0 %v2119
  %2820 = vmatprep.subr.bf16.mxu0 %v2124
  %2821 = vmatpush1.bf16.msra.mxu0 %v2123
  %2822 = vmatprep.subr.bf16.mxu0 %v2128
  %2823 = vmatpush1.bf16.msra.mxu0 %v2127
  %2824 = vmatprep.subr.bf16.mxu0 %v2132
  %2825 = vmatpush1.bf16.msra.mxu0 %v2131
  %2826 = vmatprep.subr.bf16.mxu0 %v2136
  %2827 = vmatpush1.bf16.msra.mxu0 %v2135
  %2828 = vmatprep.subr.bf16.mxu0 %v2140
  %2829 = vmatpush1.bf16.msra.mxu0 %v2139
  %2830 = vmatprep.subr.bf16.mxu0 %v2144
  %2831 = vmatpush1.bf16.msra.mxu0 %v2143
  %2832 = vmatprep.mubr.bf16.mxu0 %v500
  %2833 = vmatmul.mubr.bf16.gmra.mrb[0].mxu0 %v499
  %v2834 = vpop.f32.mrb[0].mxu0
  %v2835 = vadd.f32 %v2794, %v2834
  %v2836 = vpop.f32.mrb[0].mxu0
  %v2837 = vadd.f32 %v2796, %v2836
  %v2838 = vpop.f32.mrb[0].mxu0
  %v2839 = vpop.f32.mrb[0].mxu0
  %2840 = vdwg.mxu0
  %2841 = vmatprep.subr.bf16.mxu0 %v2148
  %2842 = vmatpush1.bf16.msra.mxu0 %v2147
  %2843 = vmatprep.subr.bf16.mxu0 %v2152
  %2844 = vmatpush1.bf16.msra.mxu0 %v2151
  %2845 = vmatprep.subr.bf16.mxu0 %v2156
  %2846 = vmatpush1.bf16.msra.mxu0 %v2155
  %2847 = vmatprep.subr.bf16.mxu0 %v2160
  %2848 = vmatpush1.bf16.msra.mxu0 %v2159
  %2849 = vmatprep.subr.bf16.mxu0 %v2164
  %2850 = vmatpush1.bf16.msra.mxu0 %v2163
  %2851 = vmatprep.subr.bf16.mxu0 %v2168
  %2852 = vmatpush1.bf16.msra.mxu0 %v2167
  %2853 = vmatprep.subr.bf16.mxu0 %v2172
  %2854 = vmatpush1.bf16.msra.mxu0 %v2171
  %2855 = vmatprep.subr.bf16.mxu0 %v2176
  %2856 = vmatpush1.bf16.msra.mxu0 %v2175
  %2857 = vmatprep.subr.bf16.mxu0 0
  %2858 = vmatpush1.bf16.msra.mxu0 0
  %2859 = vmatprep.subr.bf16.mxu0 0
  %2860 = vmatpush1.bf16.msra.mxu0 0
  %2861 = vmatprep.subr.bf16.mxu0 0
  %2862 = vmatpush1.bf16.msra.mxu0 0
  %2863 = vmatprep.subr.bf16.mxu0 0
  %2864 = vmatpush1.bf16.msra.mxu0 0
  %2865 = vmatprep.subr.bf16.mxu0 0
  %2866 = vmatpush1.bf16.msra.mxu0 0
  %2867 = vmatprep.subr.bf16.mxu0 0
  %2868 = vmatpush1.bf16.msra.mxu0 0
  %2869 = vmatprep.subr.bf16.mxu0 0
  %2870 = vmatpush1.bf16.msra.mxu0 0
  %2871 = vmatprep.subr.bf16.mxu0 0
  %2872 = vmatpush1.bf16.msra.mxu0 0
  %2873 = vmatprep.mubr.bf16.mxu0 0
  %2874 = vmatmul.mubr.bf16.gmra.mrb[0].mxu0 %v501
  %v2875 = vpop.f32.mrb[0].mxu0
  %v2876 = vadd.f32 %v2835, %v2875
  %v2877 = vpop.f32.mrb[0].mxu0
  %v2878 = vadd.f32 %v2837, %v2877
  %v2879 = vpop.f32.mrb[0].mxu0
  %v2880 = vpop.f32.mrb[0].mxu0
  %2881 = vdwg.mxu0
  %2882 = vmatprep.subr.bf16.mxu0 %v1766
  %2883 = vmatpush1.bf16.msra.mxu0 %v1765
  %2884 = vmatprep.subr.bf16.mxu0 %v1770
  %2885 = vmatpush1.bf16.msra.mxu0 %v1769
  %2886 = vmatprep.subr.bf16.mxu0 %v1774
  %2887 = vmatpush1.bf16.msra.mxu0 %v1773
  %2888 = vmatprep.subr.bf16.mxu0 %v1778
  %2889 = vmatpush1.bf16.msra.mxu0 %v1777
  %2890 = vmatprep.subr.bf16.mxu0 %v1782
  %2891 = vmatpush1.bf16.msra.mxu0 %v1781
  %2892 = vmatprep.subr.bf16.mxu0 %v1786
  %2893 = vmatpush1.bf16.msra.mxu0 %v1785
  %2894 = vmatprep.subr.bf16.mxu0 %v1790
  %2895 = vmatpush1.bf16.msra.mxu0 %v1789
  %2896 = vmatprep.subr.bf16.mxu0 %v1794
  %2897 = vmatpush1.bf16.msra.mxu0 %v1793
  %2898 = vmatprep.subr.bf16.mxu0 %v1798
  %2899 = vmatpush1.bf16.msra.mxu0 %v1797
  %2900 = vmatprep.subr.bf16.mxu0 %v1802
  %2901 = vmatpush1.bf16.msra.mxu0 %v1801
  %2902 = vmatprep.subr.bf16.mxu0 %v1806
  %2903 = vmatpush1.bf16.msra.mxu0 %v1805
  %2904 = vmatprep.subr.bf16.mxu0 %v1810
  %2905 = vmatpush1.bf16.msra.mxu0 %v1809
  %2906 = vmatprep.subr.bf16.mxu0 %v1814
  %2907 = vmatpush1.bf16.msra.mxu0 %v1813
  %2908 = vmatprep.subr.bf16.mxu0 %v1818
  %2909 = vmatpush1.bf16.msra.mxu0 %v1817
  %2910 = vmatprep.subr.bf16.mxu0 %v1822
  %2911 = vmatpush1.bf16.msra.mxu0 %v1821
  %2912 = vmatprep.subr.bf16.mxu0 %v1826
  %2913 = vmatpush1.bf16.msra.mxu0 %v1825
  %2914 = vmatprep.mubr.bf16.mxu0 %v490
  %2915 = vmatmul.mubr.bf16.gmra.mrb[0].mxu0 %v489
  %v2916 = vpop.f32.mrb[0].mxu0
  %v2917 = vadd.f32 %v460, %v2916
  %v2918 = vpop.f32.mrb[0].mxu0
  %v2919 = vadd.f32 %v464, %v2918
  %v2920 = vpop.f32.mrb[0].mxu0
  %v2921 = vpop.f32.mrb[0].mxu0
  %2922 = vdwg.mxu0
  %2923 = vmatprep.subr.bf16.mxu0 %v1830
  %2924 = vmatpush1.bf16.msra.mxu0 %v1829
  %2925 = vmatprep.subr.bf16.mxu0 %v1834
  %2926 = vmatpush1.bf16.msra.mxu0 %v1833
  %2927 = vmatprep.subr.bf16.mxu0 %v1838
  %2928 = vmatpush1.bf16.msra.mxu0 %v1837
  %2929 = vmatprep.subr.bf16.mxu0 %v1842
  %2930 = vmatpush1.bf16.msra.mxu0 %v1841
  %2931 = vmatprep.subr.bf16.mxu0 %v1846
  %2932 = vmatpush1.bf16.msra.mxu0 %v1845
  %2933 = vmatprep.subr.bf16.mxu0 %v1850
  %2934 = vmatpush1.bf16.msra.mxu0 %v1849
  %2935 = vmatprep.subr.bf16.mxu0 %v1854
  %2936 = vmatpush1.bf16.msra.mxu0 %v1853
  %2937 = vmatprep.subr.bf16.mxu0 %v1858
  %2938 = vmatpush1.bf16.msra.mxu0 %v1857
  %2939 = vmatprep.subr.bf16.mxu0 %v1862
  %2940 = vmatpush1.bf16.msra.mxu0 %v1861
  %2941 = vmatprep.subr.bf16.mxu0 %v1866
  %2942 = vmatpush1.bf16.msra.mxu0 %v1865
  %2943 = vmatprep.subr.bf16.mxu0 %v1870
  %2944 = vmatpush1.bf16.msra.mxu0 %v1869
  %2945 = vmatprep.subr.bf16.mxu0 %v1874
  %2946 = vmatpush1.bf16.msra.mxu0 %v1873
  %2947 = vmatprep.subr.bf16.mxu0 %v1878
  %2948 = vmatpush1.bf16.msra.mxu0 %v1877
  %2949 = vmatprep.subr.bf16.mxu0 %v1882
  %2950 = vmatpush1.bf16.msra.mxu0 %v1881
  %2951 = vmatprep.subr.bf16.mxu0 %v1886
  %2952 = vmatpush1.bf16.msra.mxu0 %v1885
  %2953 = vmatprep.subr.bf16.mxu0 %v1890
  %2954 = vmatpush1.bf16.msra.mxu0 %v1889
  %2955 = vmatprep.mubr.bf16.mxu0 %v492
  %2956 = vmatmul.mubr.bf16.gmra.mrb[0].mxu0 %v491
  %v2957 = vpop.f32.mrb[0].mxu0
  %v2958 = vadd.f32 %v2917, %v2957
  %v2959 = vpop.f32.mrb[0].mxu0
  %v2960 = vadd.f32 %v2919, %v2959
  %v2961 = vpop.f32.mrb[0].mxu0
  %v2962 = vpop.f32.mrb[0].mxu0
  %2963 = vdwg.mxu0
  %2964 = vmatprep.subr.bf16.mxu0 %v1894
  %2965 = vmatpush1.bf16.msra.mxu0 %v1893
  %2966 = vmatprep.subr.bf16.mxu0 %v1898
  %2967 = vmatpush1.bf16.msra.mxu0 %v1897
  %2968 = vmatprep.subr.bf16.mxu0 %v1902
  %2969 = vmatpush1.bf16.msra.mxu0 %v1901
  %2970 = vmatprep.subr.bf16.mxu0 %v1906
  %2971 = vmatpush1.bf16.msra.mxu0 %v1905
  %2972 = vmatprep.subr.bf16.mxu0 %v1910
  %2973 = vmatpush1.bf16.msra.mxu0 %v1909
  %2974 = vmatprep.subr.bf16.mxu0 %v1914
  %2975 = vmatpush1.bf16.msra.mxu0 %v1913
  %2976 = vmatprep.subr.bf16.mxu0 %v1918
  %2977 = vmatpush1.bf16.msra.mxu0 %v1917
  %2978 = vmatprep.subr.bf16.mxu0 %v1922
  %2979 = vmatpush1.bf16.msra.mxu0 %v1921
  %2980 = vmatprep.subr.bf16.mxu0 %v1926
  %2981 = vmatpush1.bf16.msra.mxu0 %v1925
  %2982 = vmatprep.subr.bf16.mxu0 %v1930
  %2983 = vmatpush1.bf16.msra.mxu0 %v1929
  %2984 = vmatprep.subr.bf16.mxu0 %v1934
  %2985 = vmatpush1.bf16.msra.mxu0 %v1933
  %2986 = vmatprep.subr.bf16.mxu0 %v1938
  %2987 = vmatpush1.bf16.msra.mxu0 %v1937
  %2988 = vmatprep.subr.bf16.mxu0 %v1942
  %2989 = vmatpush1.bf16.msra.mxu0 %v1941
  %2990 = vmatprep.subr.bf16.mxu0 %v1946
  %2991 = vmatpush1.bf16.msra.mxu0 %v1945
  %2992 = vmatprep.subr.bf16.mxu0 %v1950
  %2993 = vmatpush1.bf16.msra.mxu0 %v1949
  %2994 = vmatprep.subr.bf16.mxu0 %v1954
  %2995 = vmatpush1.bf16.msra.mxu0 %v1953
  %2996 = vmatprep.mubr.bf16.mxu0 %v494
  %2997 = vmatmul.mubr.bf16.gmra.mrb[0].mxu0 %v493
  %v2998 = vpop.f32.mrb[0].mxu0
  %v2999 = vadd.f32 %v2958, %v2998
  %v3000 = vpop.f32.mrb[0].mxu0
  %v3001 = vadd.f32 %v2960, %v3000
  %v3002 = vpop.f32.mrb[0].mxu0
  %v3003 = vpop.f32.mrb[0].mxu0
  %3004 = vdwg.mxu0
  %3005 = vmatprep.subr.bf16.mxu0 %v1958
  %3006 = vmatpush1.bf16.msra.mxu0 %v1957
  %3007 = vmatprep.subr.bf16.mxu0 %v1962
  %3008 = vmatpush1.bf16.msra.mxu0 %v1961
  %3009 = vmatprep.subr.bf16.mxu0 %v1966
  %3010 = vmatpush1.bf16.msra.mxu0 %v1965
  %3011 = vmatprep.subr.bf16.mxu0 %v1970
  %3012 = vmatpush1.bf16.msra.mxu0 %v1969
  %3013 = vmatprep.subr.bf16.mxu0 %v1974
  %3014 = vmatpush1.bf16.msra.mxu0 %v1973
  %3015 = vmatprep.subr.bf16.mxu0 %v1978
  %3016 = vmatpush1.bf16.msra.mxu0 %v1977
  %3017 = vmatprep.subr.bf16.mxu0 %v1982
  %3018 = vmatpush1.bf16.msra.mxu0 %v1981
  %3019 = vmatprep.subr.bf16.mxu0 %v1986
  %3020 = vmatpush1.bf16.msra.mxu0 %v1985
  %3021 = vmatprep.subr.bf16.mxu0 %v1990
  %3022 = vmatpush1.bf16.msra.mxu0 %v1989
  %3023 = vmatprep.subr.bf16.mxu0 %v1994
  %3024 = vmatpush1.bf16.msra.mxu0 %v1993
  %3025 = vmatprep.subr.bf16.mxu0 %v1998
  %3026 = vmatpush1.bf16.msra.mxu0 %v1997
  %3027 = vmatprep.subr.bf16.mxu0 %v2002
  %3028 = vmatpush1.bf16.msra.mxu0 %v2001
  %3029 = vmatprep.subr.bf16.mxu0 %v2006
  %3030 = vmatpush1.bf16.msra.mxu0 %v2005
  %3031 = vmatprep.subr.bf16.mxu0 %v2010
  %3032 = vmatpush1.bf16.msra.mxu0 %v2009
  %3033 = vmatprep.subr.bf16.mxu0 %v2014
  %3034 = vmatpush1.bf16.msra.mxu0 %v2013
  %3035 = vmatprep.subr.bf16.mxu0 %v2018
  %3036 = vmatpush1.bf16.msra.mxu0 %v2017
  %3037 = vmatprep.mubr.bf16.mxu0 %v496
  %3038 = vmatmul.mubr.bf16.gmra.mrb[0].mxu0 %v495
  %v3039 = vpop.f32.mrb[0].mxu0
  %v3040 = vadd.f32 %v2999, %v3039
  %v3041 = vpop.f32.mrb[0].mxu0
  %v3042 = vadd.f32 %v3001, %v3041
  %v3043 = vpop.f32.mrb[0].mxu0
  %v3044 = vpop.f32.mrb[0].mxu0
  %3045 = vdwg.mxu0
  %3046 = vmatprep.subr.bf16.mxu0 %v2022
  %3047 = vmatpush1.bf16.msra.mxu0 %v2021
  %3048 = vmatprep.subr.bf16.mxu0 %v2026
  %3049 = vmatpush1.bf16.msra.mxu0 %v2025
  %3050 = vmatprep.subr.bf16.mxu0 %v2030
  %3051 = vmatpush1.bf16.msra.mxu0 %v2029
  %3052 = vmatprep.subr.bf16.mxu0 %v2034
  %3053 = vmatpush1.bf16.msra.mxu0 %v2033
  %3054 = vmatprep.subr.bf16.mxu0 %v2038
  %3055 = vmatpush1.bf16.msra.mxu0 %v2037
  %3056 = vmatprep.subr.bf16.mxu0 %v2042
  %3057 = vmatpush1.bf16.msra.mxu0 %v2041
  %3058 = vmatprep.subr.bf16.mxu0 %v2046
  %3059 = vmatpush1.bf16.msra.mxu0 %v2045
  %3060 = vmatprep.subr.bf16.mxu0 %v2050
  %3061 = vmatpush1.bf16.msra.mxu0 %v2049
  %3062 = vmatprep.subr.bf16.mxu0 %v2054
  %3063 = vmatpush1.bf16.msra.mxu0 %v2053
  %3064 = vmatprep.subr.bf16.mxu0 %v2058
  %3065 = vmatpush1.bf16.msra.mxu0 %v2057
  %3066 = vmatprep.subr.bf16.mxu0 %v2062
  %3067 = vmatpush1.bf16.msra.mxu0 %v2061
  %3068 = vmatprep.subr.bf16.mxu0 %v2066
  %3069 = vmatpush1.bf16.msra.mxu0 %v2065
  %3070 = vmatprep.subr.bf16.mxu0 %v2070
  %3071 = vmatpush1.bf16.msra.mxu0 %v2069
  %3072 = vmatprep.subr.bf16.mxu0 %v2074
  %3073 = vmatpush1.bf16.msra.mxu0 %v2073
  %3074 = vmatprep.subr.bf16.mxu0 %v2078
  %3075 = vmatpush1.bf16.msra.mxu0 %v2077
  %3076 = vmatprep.subr.bf16.mxu0 %v2082
  %3077 = vmatpush1.bf16.msra.mxu0 %v2081
  %3078 = vmatprep.mubr.bf16.mxu0 %v498
  %3079 = vmatmul.mubr.bf16.gmra.mrb[0].mxu0 %v497
  %v3080 = vpop.f32.mrb[0].mxu0
  %v3081 = vadd.f32 %v3040, %v3080
  %v3082 = vpop.f32.mrb[0].mxu0
  %v3083 = vadd.f32 %v3042, %v3082
  %v3084 = vpop.f32.mrb[0].mxu0
  %v3085 = vpop.f32.mrb[0].mxu0
  %3086 = vdwg.mxu0
  %3087 = vmatprep.subr.bf16.mxu0 %v2086
  %3088 = vmatpush1.bf16.msra.mxu0 %v2085
  %3089 = vmatprep.subr.bf16.mxu0 %v2090
  %3090 = vmatpush1.bf16.msra.mxu0 %v2089
  %3091 = vmatprep.subr.bf16.mxu0 %v2094
  %3092 = vmatpush1.bf16.msra.mxu0 %v2093
  %3093 = vmatprep.subr.bf16.mxu0 %v2098
  %3094 = vmatpush1.bf16.msra.mxu0 %v2097
  %3095 = vmatprep.subr.bf16.mxu0 %v2102
  %3096 = vmatpush1.bf16.msra.mxu0 %v2101
  %3097 = vmatprep.subr.bf16.mxu0 %v2106
  %3098 = vmatpush1.bf16.msra.mxu0 %v2105
  %3099 = vmatprep.subr.bf16.mxu0 %v2110
  %3100 = vmatpush1.bf16.msra.mxu0 %v2109
  %3101 = vmatprep.subr.bf16.mxu0 %v2114
  %3102 = vmatpush1.bf16.msra.mxu0 %v2113
  %3103 = vmatprep.subr.bf16.mxu0 %v2118
  %3104 = vmatpush1.bf16.msra.mxu0 %v2117
  %3105 = vmatprep.subr.bf16.mxu0 %v2122
  %3106 = vmatpush1.bf16.msra.mxu0 %v2121
  %3107 = vmatprep.subr.bf16.mxu0 %v2126
  %3108 = vmatpush1.bf16.msra.mxu0 %v2125
  %3109 = vmatprep.subr.bf16.mxu0 %v2130
  %3110 = vmatpush1.bf16.msra.mxu0 %v2129
  %3111 = vmatprep.subr.bf16.mxu0 %v2134
  %3112 = vmatpush1.bf16.msra.mxu0 %v2133
  %3113 = vmatprep.subr.bf16.mxu0 %v2138
  %3114 = vmatpush1.bf16.msra.mxu0 %v2137
  %3115 = vmatprep.subr.bf16.mxu0 %v2142
  %3116 = vmatpush1.bf16.msra.mxu0 %v2141
  %3117 = vmatprep.subr.bf16.mxu0 %v2146
  %3118 = vmatpush1.bf16.msra.mxu0 %v2145
  %3119 = vmatprep.mubr.bf16.mxu0 %v500
  %3120 = vmatmul.mubr.bf16.gmra.mrb[0].mxu0 %v499
  %v3121 = vpop.f32.mrb[0].mxu0
  %v3122 = vadd.f32 %v3081, %v3121
  %v3123 = vpop.f32.mrb[0].mxu0
  %v3124 = vadd.f32 %v3083, %v3123
  %v3125 = vpop.f32.mrb[0].mxu0
  %v3126 = vpop.f32.mrb[0].mxu0
  %3127 = vdwg.mxu0
  %3128 = vmatprep.subr.bf16.mxu0 %v2150
  %3129 = vmatpush1.bf16.msra.mxu0 %v2149
  %3130 = vmatprep.subr.bf16.mxu0 %v2154
  %3131 = vmatpush1.bf16.msra.mxu0 %v2153
  %3132 = vmatprep.subr.bf16.mxu0 %v2158
  %3133 = vmatpush1.bf16.msra.mxu0 %v2157
  %3134 = vmatprep.subr.bf16.mxu0 %v2162
  %3135 = vmatpush1.bf16.msra.mxu0 %v2161
  %3136 = vmatprep.subr.bf16.mxu0 %v2166
  %3137 = vmatpush1.bf16.msra.mxu0 %v2165
  %3138 = vmatprep.subr.bf16.mxu0 %v2170
  %3139 = vmatpush1.bf16.msra.mxu0 %v2169
  %3140 = vmatprep.subr.bf16.mxu0 %v2174
  %3141 = vmatpush1.bf16.msra.mxu0 %v2173
  %3142 = vmatprep.subr.bf16.mxu0 %v2178
  %3143 = vmatpush1.bf16.msra.mxu0 %v2177
  %3144 = vmatprep.subr.bf16.mxu0 0
  %3145 = vmatpush1.bf16.msra.mxu0 0
  %3146 = vmatprep.subr.bf16.mxu0 0
  %3147 = vmatpush1.bf16.msra.mxu0 0
  %3148 = vmatprep.subr.bf16.mxu0 0
  %3149 = vmatpush1.bf16.msra.mxu0 0
  %3150 = vmatprep.subr.bf16.mxu0 0
  %3151 = vmatpush1.bf16.msra.mxu0 0
  %3152 = vmatprep.subr.bf16.mxu0 0
  %3153 = vmatpush1.bf16.msra.mxu0 0
  %3154 = vmatprep.subr.bf16.mxu0 0
  %3155 = vmatpush1.bf16.msra.mxu0 0
  %3156 = vmatprep.subr.bf16.mxu0 0
  %3157 = vmatpush1.bf16.msra.mxu0 0
  %3158 = vmatprep.subr.bf16.mxu0 0
  %3159 = vmatpush1.bf16.msra.mxu0 0
  %3160 = vmatprep.mubr.bf16.mxu0 0
  %3161 = vmatmul.mubr.bf16.gmra.mrb[0].mxu0 %v501
  %v3162 = vpop.f32.mrb[0].mxu0
  %v3163 = vadd.f32 %v3122, %v3162
  %v3164 = vpop.f32.mrb[0].mxu0
  %v3165 = vadd.f32 %v3124, %v3164
  %v3166 = vpop.f32.mrb[0].mxu0
  %v3167 = vpop.f32.mrb[0].mxu0
  %3168 = vdwg.mxu0
  %v3169 = vmax.f32 %v2876, 0.0
  %v3170 = vmax.f32 %v2878, 0.0
  %v3171 = vmax.f32 %v3163, 0.0
  %v3172 = vmax.f32 %v3165, 0.0
  %v3173 = vpack.c.bf16 %v3169, %v3169
  %v3174 = vpack.c.bf16 %v3170, %v3170
  %v3175 = vpack.c.bf16 %v3171, %v3171
  %v3176 = vpack.c.bf16 %v3172, %v3172
  %v3177 = vld [vmem:[%s4] sm:$0xf]
  %v3178 = vld [vmem:[%s4 + $0x4] sm:$0xf]
  %v3179 = vld [vmem:[%s4 + $0x8] sm:$0xf]
  %v3180 = vld [vmem:[%s4 + $0xc] sm:$0xf]
  %v3181 = vld [vmem:[%s4 + $0x10] sm:$0xf]
  %v3182 = vld [vmem:[%s4 + $0x14] sm:$0xf]
  %v3183 = vld [vmem:[%s4 + $0x18] sm:$0xf]
  %v3184 = vld [vmem:[%s4 + $0x1c] sm:$0xf]
  %v3185 = vld [vmem:[%s4 + $0x20] sm:$0xf]
  %v3186 = vld [vmem:[%s4 + $0x24] sm:$0xf]
  %v3187 = vld [vmem:[%s4 + $0x28] sm:$0xf]
  %v3188 = vld [vmem:[%s4 + $0x2c] sm:$0xf]
  %v3189 = vld [vmem:[%s4 + $0x30] sm:$0xf]
  %v3190 = vld [vmem:[%s4 + $0x34] sm:$0xf]
  %v3191 = vld [vmem:[%s4 + $0x38] sm:$0xf]
  %v3192 = vld [vmem:[%s4 + $0x3c] sm:$0xf]
  %v3193 = vld [vmem:[%s4 + $0x40] sm:$0xf]
  %v3194 = vld [vmem:[%s4 + $0x44] sm:$0xf]
  %v3195 = vld [vmem:[%s4 + $0x48] sm:$0xf]
  %v3196 = vld [vmem:[%s4 + $0x4c] sm:$0xf]
  %v3197 = vld [vmem:[%s4 + $0x50] sm:$0xf]
  %v3198 = vld [vmem:[%s4 + $0x54] sm:$0xf]
  %v3199 = vld [vmem:[%s4 + $0x58] sm:$0xf]
  %v3200 = vld [vmem:[%s4 + $0x5c] sm:$0xf]
  %v3201 = vld [vmem:[%s4 + $0x60] sm:$0xf]
  %v3202 = vld [vmem:[%s4 + $0x64] sm:$0xf]
  %v3203 = vld [vmem:[%s4 + $0x68] sm:$0xf]
  %v3204 = vld [vmem:[%s4 + $0x6c] sm:$0xf]
  %v3205 = vld [vmem:[%s4 + $0x70] sm:$0xf]
  %v3206 = vld [vmem:[%s4 + $0x74] sm:$0xf]
  %v3207 = vld [vmem:[%s4 + $0x78] sm:$0xf]
  %v3208 = vld [vmem:[%s4 + $0x7c] sm:$0xf]
  %v3209 = vld [vmem:[%s4 + $0x80] sm:$0xf]
  %v3210 = vld [vmem:[%s4 + $0x84] sm:$0xf]
  %v3211 = vld [vmem:[%s4 + $0x88] sm:$0xf]
  %v3212 = vld [vmem:[%s4 + $0x8c] sm:$0xf]
  %v3213 = vld [vmem:[%s4 + $0x90] sm:$0xf]
  %v3214 = vld [vmem:[%s4 + $0x94] sm:$0xf]
  %v3215 = vld [vmem:[%s4 + $0x98] sm:$0xf]
  %v3216 = vld [vmem:[%s4 + $0x9c] sm:$0xf]
  %v3217 = vld [vmem:[%s4 + $0xa0] sm:$0xf]
  %v3218 = vld [vmem:[%s4 + $0xa4] sm:$0xf]
  %v3219 = vld [vmem:[%s4 + $0xa8] sm:$0xf]
  %v3220 = vld [vmem:[%s4 + $0xac] sm:$0xf]
  %v3221 = vld [vmem:[%s4 + $0xb0] sm:$0xf]
  %v3222 = vld [vmem:[%s4 + $0xb4] sm:$0xf]
  %v3223 = vld [vmem:[%s4 + $0xb8] sm:$0xf]
  %v3224 = vld [vmem:[%s4 + $0xbc] sm:$0xf]
  %v3225 = vld [vmem:[%s4 + $0xc0] sm:$0xf]
  %v3226 = vld [vmem:[%s4 + $0xc4] sm:$0xf]
  %v3227 = vld [vmem:[%s4 + $0xc8] sm:$0xf]
  %v3228 = vld [vmem:[%s4 + $0xcc] sm:$0xf]
  %v3229 = vld [vmem:[%s4 + $0xd0] sm:$0xf]
  %v3230 = vld [vmem:[%s4 + $0xd4] sm:$0xf]
  %v3231 = vld [vmem:[%s4 + $0xd8] sm:$0xf]
  %v3232 = vld [vmem:[%s4 + $0xdc] sm:$0xf]
  %v3233 = vld [vmem:[%s4 + $0xe0] sm:$0xf]
  %v3234 = vld [vmem:[%s4 + $0xe4] sm:$0xf]
  %v3235 = vld [vmem:[%s4 + $0xe8] sm:$0xf]
  %v3236 = vld [vmem:[%s4 + $0xec] sm:$0xf]
  %v3237 = vld [vmem:[%s4 + $0xf0] sm:$0xf]
  %v3238 = vld [vmem:[%s4 + $0xf4] sm:$0xf]
  %v3239 = vld [vmem:[%s4 + $0xf8] sm:$0xf]
  %v3240 = vld [vmem:[%s4 + $0xfc] sm:$0xf]
  %v3241 = vld [vmem:[%s5] sm:$0x1]
  %v3243 = vlaneseq
  %v3244 = vshrl.u32 %v3243, 7
  %v3245 = vsub.s32 0, %v3244
  %v3246 = vrot.slane %v3241, %v3245
  %v3312 = vunpack.c.l.b16 %v3177
  %v3313 = vunpack.c.l.b16 %v3178
  %v3314 = vunpack.c.l.b16 %v3179
  %v3315 = vunpack.c.l.b16 %v3180
  %v3316 = vunpack.c.l.b16 %v3181
  %v3317 = vunpack.c.l.b16 %v3182
  %v3318 = vunpack.c.l.b16 %v3183
  %v3319 = vunpack.c.l.b16 %v3184
  %v3320 = vunpack.c.l.b16 %v3185
  %v3321 = vunpack.c.l.b16 %v3186
  %v3322 = vunpack.c.l.b16 %v3187
  %v3323 = vunpack.c.l.b16 %v3188
  %v3324 = vunpack.c.l.b16 %v3189
  %v3325 = vunpack.c.l.b16 %v3190
  %v3326 = vunpack.c.l.b16 %v3191
  %v3327 = vunpack.c.l.b16 %v3192
  %v3328 = vunpack.c.l.b16 %v3193
  %v3329 = vunpack.c.l.b16 %v3194
  %v3330 = vunpack.c.l.b16 %v3195
  %v3331 = vunpack.c.l.b16 %v3196
  %v3332 = vunpack.c.l.b16 %v3197
  %v3333 = vunpack.c.l.b16 %v3198
  %v3334 = vunpack.c.l.b16 %v3199
  %v3335 = vunpack.c.l.b16 %v3200
  %v3336 = vunpack.c.l.b16 %v3201
  %v3337 = vunpack.c.l.b16 %v3202
  %v3338 = vunpack.c.l.b16 %v3203
  %v3339 = vunpack.c.l.b16 %v3204
  %v3340 = vunpack.c.l.b16 %v3205
  %v3341 = vunpack.c.l.b16 %v3206
  %v3342 = vunpack.c.l.b16 %v3207
  %v3343 = vunpack.c.l.b16 %v3208
  %v3344 = vunpack.c.l.b16 %v3209
  %v3345 = vunpack.c.l.b16 %v3210
  %v3346 = vunpack.c.l.b16 %v3211
  %v3347 = vunpack.c.l.b16 %v3212
  %v3348 = vunpack.c.l.b16 %v3213
  %v3349 = vunpack.c.l.b16 %v3214
  %v3350 = vunpack.c.l.b16 %v3215
  %v3351 = vunpack.c.l.b16 %v3216
  %v3352 = vunpack.c.l.b16 %v3217
  %v3353 = vunpack.c.l.b16 %v3218
  %v3354 = vunpack.c.l.b16 %v3219
  %v3355 = vunpack.c.l.b16 %v3220
  %v3356 = vunpack.c.l.b16 %v3221
  %v3357 = vunpack.c.l.b16 %v3222
  %v3358 = vunpack.c.l.b16 %v3223
  %v3359 = vunpack.c.l.b16 %v3224
  %v3360 = vunpack.c.l.b16 %v3225
  %v3361 = vunpack.c.l.b16 %v3226
  %v3362 = vunpack.c.l.b16 %v3227
  %v3363 = vunpack.c.l.b16 %v3228
  %v3364 = vunpack.c.l.b16 %v3229
  %v3365 = vunpack.c.l.b16 %v3230
  %v3366 = vunpack.c.l.b16 %v3231
  %v3367 = vunpack.c.l.b16 %v3232
  %v3368 = vunpack.c.l.b16 %v3233
  %v3369 = vunpack.c.l.b16 %v3234
  %v3370 = vunpack.c.l.b16 %v3235
  %v3371 = vunpack.c.l.b16 %v3236
  %v3372 = vunpack.c.l.b16 %v3237
  %v3373 = vunpack.c.l.b16 %v3238
  %v3374 = vunpack.c.l.b16 %v3239
  %v3375 = vunpack.c.l.b16 %v3240
  %v3376 = vpack.c.b16 %v3313, %v3312
  %v3377 = vpack.c.b16 %v3315, %v3314
  %v3378 = vpack.c.b16 %v3317, %v3316
  %v3379 = vpack.c.b16 %v3319, %v3318
  %v3380 = vpack.c.b16 %v3321, %v3320
  %v3381 = vpack.c.b16 %v3323, %v3322
  %v3382 = vpack.c.b16 %v3325, %v3324
  %v3383 = vpack.c.b16 %v3327, %v3326
  %v3384 = vpack.c.b16 %v3329, %v3328
  %v3385 = vpack.c.b16 %v3331, %v3330
  %v3386 = vpack.c.b16 %v3333, %v3332
  %v3387 = vpack.c.b16 %v3335, %v3334
  %v3388 = vpack.c.b16 %v3337, %v3336
  %v3389 = vpack.c.b16 %v3339, %v3338
  %v3390 = vpack.c.b16 %v3341, %v3340
  %v3391 = vpack.c.b16 %v3343, %v3342
  %v3392 = vpack.c.b16 %v3345, %v3344
  %v3393 = vpack.c.b16 %v3347, %v3346
  %v3394 = vpack.c.b16 %v3349, %v3348
  %v3395 = vpack.c.b16 %v3351, %v3350
  %v3396 = vpack.c.b16 %v3353, %v3352
  %v3397 = vpack.c.b16 %v3355, %v3354
  %v3398 = vpack.c.b16 %v3357, %v3356
  %v3399 = vpack.c.b16 %v3359, %v3358
  %v3400 = vpack.c.b16 %v3361, %v3360
  %v3401 = vpack.c.b16 %v3363, %v3362
  %v3402 = vpack.c.b16 %v3365, %v3364
  %v3403 = vpack.c.b16 %v3367, %v3366
  %v3404 = vpack.c.b16 %v3369, %v3368
  %v3405 = vpack.c.b16 %v3371, %v3370
  %v3406 = vpack.c.b16 %v3373, %v3372
  %v3407 = vpack.c.b16 %v3375, %v3374
  %3440 = vmatprep.subr.bf16.mxu0 0
  %3441 = vmatpush1.bf16.msra.mxu0 %v3376
  %3442 = vmatprep.subr.bf16.mxu0 0
  %3443 = vmatpush1.bf16.msra.mxu0 %v3377
  %3444 = vmatprep.subr.bf16.mxu0 0
  %3445 = vmatpush1.bf16.msra.mxu0 %v3378
  %3446 = vmatprep.subr.bf16.mxu0 0
  %3447 = vmatpush1.bf16.msra.mxu0 %v3379
  %3448 = vmatprep.subr.bf16.mxu0 0
  %3449 = vmatpush1.bf16.msra.mxu0 %v3380
  %3450 = vmatprep.subr.bf16.mxu0 0
  %3451 = vmatpush1.bf16.msra.mxu0 %v3381
  %3452 = vmatprep.subr.bf16.mxu0 0
  %3453 = vmatpush1.bf16.msra.mxu0 %v3382
  %3454 = vmatprep.subr.bf16.mxu0 0
  %3455 = vmatpush1.bf16.msra.mxu0 %v3383
  %3456 = vmatprep.subr.bf16.mxu0 0
  %3457 = vmatpush1.bf16.msra.mxu0 %v3384
  %3458 = vmatprep.subr.bf16.mxu0 0
  %3459 = vmatpush1.bf16.msra.mxu0 %v3385
  %3460 = vmatprep.subr.bf16.mxu0 0
  %3461 = vmatpush1.bf16.msra.mxu0 %v3386
  %3462 = vmatprep.subr.bf16.mxu0 0
  %3463 = vmatpush1.bf16.msra.mxu0 %v3387
  %3464 = vmatprep.subr.bf16.mxu0 0
  %3465 = vmatpush1.bf16.msra.mxu0 %v3388
  %3466 = vmatprep.subr.bf16.mxu0 0
  %3467 = vmatpush1.bf16.msra.mxu0 %v3389
  %3468 = vmatprep.subr.bf16.mxu0 0
  %3469 = vmatpush1.bf16.msra.mxu0 %v3390
  %3470 = vmatprep.subr.bf16.mxu0 0
  %3471 = vmatpush1.bf16.msra.mxu0 %v3391
  %3472 = vmatprep.mubr.bf16.mxu0 %v3174
  %3473 = vmatmul.mubr.bf16.gmra.mrb[0].mxu0 %v3173
  %v3474 = vpop.f32.mrb[0].mxu0
  %v3475 = vadd.f32 %v3246, %v3474
  %v3476 = vpop.f32.mrb[0].mxu0
  %v3477 = vpop.f32.mrb[0].mxu0
  %v3478 = vpop.f32.mrb[0].mxu0
  %3479 = vdwg.mxu0
  %3480 = vmatprep.subr.bf16.mxu0 0
  %3481 = vmatpush1.bf16.msra.mxu0 %v3392
  %3482 = vmatprep.subr.bf16.mxu0 0
  %3483 = vmatpush1.bf16.msra.mxu0 %v3393
  %3484 = vmatprep.subr.bf16.mxu0 0
  %3485 = vmatpush1.bf16.msra.mxu0 %v3394
  %3486 = vmatprep.subr.bf16.mxu0 0
  %3487 = vmatpush1.bf16.msra.mxu0 %v3395
  %3488 = vmatprep.subr.bf16.mxu0 0
  %3489 = vmatpush1.bf16.msra.mxu0 %v3396
  %3490 = vmatprep.subr.bf16.mxu0 0
  %3491 = vmatpush1.bf16.msra.mxu0 %v3397
  %3492 = vmatprep.subr.bf16.mxu0 0
  %3493 = vmatpush1.bf16.msra.mxu0 %v3398
  %3494 = vmatprep.subr.bf16.mxu0 0
  %3495 = vmatpush1.bf16.msra.mxu0 %v3399
  %3496 = vmatprep.subr.bf16.mxu0 0
  %3497 = vmatpush1.bf16.msra.mxu0 %v3400
  %3498 = vmatprep.subr.bf16.mxu0 0
  %3499 = vmatpush1.bf16.msra.mxu0 %v3401
  %3500 = vmatprep.subr.bf16.mxu0 0
  %3501 = vmatpush1.bf16.msra.mxu0 %v3402
  %3502 = vmatprep.subr.bf16.mxu0 0
  %3503 = vmatpush1.bf16.msra.mxu0 %v3403
  %3504 = vmatprep.subr.bf16.mxu0 0
  %3505 = vmatpush1.bf16.msra.mxu0 %v3404
  %3506 = vmatprep.subr.bf16.mxu0 0
  %3507 = vmatpush1.bf16.msra.mxu0 %v3405
  %3508 = vmatprep.subr.bf16.mxu0 0
  %3509 = vmatpush1.bf16.msra.mxu0 %v3406
  %3510 = vmatprep.subr.bf16.mxu0 0
  %3511 = vmatpush1.bf16.msra.mxu0 %v3407
  %3512 = vmatprep.mubr.bf16.mxu0 %v3176
  %3513 = vmatmul.mubr.bf16.gmra.mrb[0].mxu0 %v3175
  %v3514 = vpop.f32.mrb[0].mxu0
  %v3515 = vadd.f32 %v3475, %v3514
  %v3516 = vpop.f32.mrb[0].mxu0
  %v3517 = vpop.f32.mrb[0].mxu0
  %v3518 = vpop.f32.mrb[0].mxu0
  %3519 = vdwg.mxu0
  %v3520 = vmul.f32 %v3515, 1.442695
  %v3521 = vpow.pop %v3520
  %v3522 = vld [vmem:[%s1] sm:$0xff]
  %3524 = vrot.lane.b32.xlu0 %v3522, 32
  %v3525 = vpop.permute.xlu0 %3524
  %v3527 = vmul.f32 %v3521, %v3525
  %3529 = vrot.lane.b32.xlu0 %v3527, 96
  %v3530 = vpop.permute.xlu0 %3529
  %v3532 = vadd.f32 %v3515, %v3530
  %v3533 = vmul.f32 %v3521, %v3521
  %v3534 = vmul.f32 %v3515, %v3515
  %3536 = vrot.lane.b32.xlu0 %v3534, 32
  %v3537 = vpop.permute.xlu0 %3536
  %v3539 = vadd.f32 %v3533, %v3537
  %v3540 = vmul.f32 %v3515, 2.0
  %v3541 = vsub.f32 %v3539, %v3540
  %v3542 = vsub.f32 %v3541, 1.0
  %3544 = vrot.lane.b32.xlu0 %v3542, 96
  %v3545 = vpop.permute.xlu0 %3544
  %vm3547 = vcmask 261120
  %v3548 = vsel %vm3547, %v3545, 0.0
  %3549 = vadd.xlane.f32.xlu0 %v3548
  %v3550 = vpop.xlane.xlu0 %3549
  %v3551 = vmul.f32 %v3550, 0.5
  %v3552 = vlaneseq
  %v3553 = vand.u32 %v3552, 127
  %vm3554 = vcmp.eq.s32.totalorder %v3553, 0
  %v3555 = vsel %vm3554, %v3551, 0.0
  %3557 = vrot.lane.b32.xlu0 %v3515, 32
  %v3558 = vpop.permute.xlu0 %3557
  %3561 = vrot.lane.b32.xlu0 %v3521, 32
  %v3562 = vpop.permute.xlu0 %3561
  %3565 = vrot.lane.b32.xlu0 %v3555, 96
  %v3566 = vpop.permute.xlu0 %3565
  %v3568 = vsel %vm3547, %v3532, %v3558
  %vm3569 = vcmask 523264
  %v3570 = vsel %vm3569, %v3568, %v3562
  %vm3571 = vcmask 785408
  %v3572 = vsel %vm3571, %v3570, %v3566
  %3573 = vst [vmem:[%s6] sm:$0xff] %v3572
  // Predicated region
  $region26: #{variational_encoder_forward.1} parent=0 // pred_check
    _
  $region27: #{variational_encoder_forward.1} parent=0 // pred_check_branch
    %3575 = sbr.rel (0) target = $region29
  $region28: #{variational_encoder_forward.1} parent=0 // pred_region
    _
  $region29: #{variational_encoder_forward.1} parent=0 // pred_fallthru
    _
  // Predicated region
  $region30: #{variational_encoder_forward.1} parent=0 // pred_check
    _
  $region31: #{variational_encoder_forward.1} parent=0 // pred_check_branch
    %3577 = sbr.rel (0) target = $region33
  $region32: #{variational_encoder_forward.1} parent=0 // pred_region
    _
  $region33: #{variational_encoder_forward.1} parent=0 // pred_fallthru
    _

</llo_original>
